<compile_context>
chip_gen: v7x
topology: tpu7x:2x2x1
jax: 0.10.0
libtpu: 0.0.40
codegen_flags: <defaults>
</compile_context>

<pallas_src>
import functools

import jax
import jax.numpy as jnp
from jax.experimental import pallas as pl
from jax.experimental.pallas import tpu as pltpu

LANE = 128
SUBLANE = 8


def _round_up(x, m):
    return (x + m - 1) // m * m


def _cdiv(a, b):
    return (a + b - 1) // b


# ----------------------------------------------------------------------------
# Pallas kernel (per batch tile of TB rows):
#   pooler = tanh(mean @ W_pool + b_pool)                       (TB, 768)
#   x      = relu(pooler @ W1 + img_feat @ W2 + b_fused)        (TB, 128)
#            [== text_fc / cnn.fc / concat / fusion, folded]
#   x      = dropout(x) -> identity (inference)
#   out    = x @ Wc_pad + bc_pad                                (TB, 128)
# All matmul operands bf16 (MXU-native); accumulate + epilogue in f32.
# ----------------------------------------------------------------------------
def head_kernel(mean_ref, img_ref,
                w_pool_ref, b_pool_ref,
                w1_ref, w2_ref, bfused_ref,
                wc_ref, bc_ref,
                out_ref):
    # BERT pooler (stub): tanh projection fused into the kernel.
    pooler_f32 = jnp.tanh(
        jnp.dot(mean_ref[...], w_pool_ref[...],
                preferred_element_type=jnp.float32) + b_pool_ref[...])
    pooler = pooler_f32.astype(jnp.bfloat16)

    # Folded text_fc + cnn.fc + fusion (no concat: two dots summed).
    x = jnp.dot(pooler, w1_ref[...], preferred_element_type=jnp.float32)
    x = x + jnp.dot(img_ref[...], w2_ref[...],
                    preferred_element_type=jnp.float32)
    x = jnp.maximum(x + bfused_ref[...], 0.0)          # ReLU, f32
    # Dropout(p=0.3) is identity at inference time.

    # Classifier, lane-padded to 128 output columns (unmasked store).
    out_ref[...] = jnp.dot(x.astype(jnp.bfloat16), wc_ref[...],
                           preferred_element_type=jnp.float32) + bc_ref[...]


# ----------------------------------------------------------------------------
# One-time weight fold + lane padding + bf16 cast.  Call ONCE at load time,
# outside the jitted forward path.
# ----------------------------------------------------------------------------
def fold_head_params(p):
    wf_top = p["Wf"][:256, :]                 # (256, 128)
    wf_bot = p["Wf"][256:, :]                 # (256, 128)
    w1 = p["Wt"] @ wf_top                     # (768, 128)
    w2 = p["Wi"] @ wf_bot                     # (512, 128)
    b_fused = p["bt"] @ wf_top + p["bi"] @ wf_bot + p["bf"]   # (1, 128)

    num_classes = p["Wc"].shape[1]
    c_pad = _round_up(num_classes, LANE)
    wc_pad = jnp.zeros((128, c_pad), jnp.float32).at[:, :num_classes].set(p["Wc"])
    bc_pad = jnp.zeros((1, c_pad), jnp.float32).at[:, :num_classes].set(p["bc"])

    return dict(
        w_pool=p["w_pool"].astype(jnp.bfloat16),
        b_pool=p["b_pool"].reshape(1, -1).astype(jnp.float32),
        w1=w1.astype(jnp.bfloat16),
        w2=w2.astype(jnp.bfloat16),
        b_fused=b_fused.astype(jnp.float32),
        wc=wc_pad.astype(jnp.bfloat16),
        bc=bc_pad,
    )


# ----------------------------------------------------------------------------
# Pallas wrapper: balanced batch tiling, lane-padded output, 1-D parallel grid.
# ----------------------------------------------------------------------------
def multimodal_head(mean, img_feat, folded, num_classes, *, tb_max=512):
    B = mean.shape[0]
    # Balanced tile selection; >= 2 tiles whenever B > SUBLANE so v7x's second
    # TensorCore gets work.  Padding is capped at < SUBLANE rows per tile.
    min_tiles = 2 if B > SUBLANE else 1
    num_tiles = max(_cdiv(B, tb_max), min_tiles)
    tb = _round_up(_cdiv(B, num_tiles), SUBLANE)
    b_pad = num_tiles * tb

    mean = mean.astype(jnp.bfloat16)
    img_feat = img_feat.astype(jnp.bfloat16)
    if b_pad != B:
        mean = jnp.pad(mean, ((0, b_pad - B), (0, 0)))
        img_feat = jnp.pad(img_feat, ((0, b_pad - B), (0, 0)))

    c_pad = folded["wc"].shape[1]
    grid = (num_tiles,)

    # Constant-index weight/bias blocks: single-buffered (no wasted 2nd buf).
    def const_spec(shape):
        return pl.BlockSpec(shape, lambda i: (0, 0),
                            pipeline_mode=pl.Buffered(1))

    flops = 2 * b_pad * (768 * 768 + 768 * 128 + 512 * 128 + 128 * c_pad)
    bytes_accessed = (
        2 * b_pad * (768 + 512)                               # bf16 activations in
        + 4 * b_pad * c_pad                                   # f32 logits out
        + 2 * (768 * 768 + 768 * 128 + 512 * 128 + 128 * c_pad)   # bf16 weights
        + 4 * (768 + 128 + c_pad))                            # f32 biases

    out = pl.pallas_call(
        head_kernel,
        out_shape=jax.ShapeDtypeStruct((b_pad, c_pad), jnp.float32),
        grid_spec=pltpu.PrefetchScalarGridSpec(
            num_scalar_prefetch=0,
            grid=grid,
            in_specs=[
                pl.BlockSpec((tb, 768), lambda i: (i, 0)),      # mean (bf16)
                pl.BlockSpec((tb, 512), lambda i: (i, 0)),      # img_feat (bf16)
                const_spec((768, 768)),                         # W_pool (bf16)
                const_spec((1, 768)),                           # b_pool (f32)
                const_spec((768, 128)),                         # W1 folded (bf16)
                const_spec((512, 128)),                         # W2 folded (bf16)
                const_spec((1, 128)),                           # b_fused (f32)
                const_spec((128, c_pad)),                       # Wc padded (bf16)
                const_spec((1, c_pad)),                         # bc padded (f32)
            ],
            out_specs=pl.BlockSpec((tb, c_pad), lambda i: (i, 0)),
        ),
        compiler_params=pltpu.CompilerParams(
            dimension_semantics=("parallel",)),
        cost_estimate=pl.CostEstimate(
            flops=flops, transcendentals=b_pad * 768,
            bytes_accessed=bytes_accessed),
    )(mean, img_feat,
      folded["w_pool"], folded["b_pool"],
      folded["w1"], folded["w2"], folded["b_fused"],
      folded["wc"], folded["bc"])

    return out[:B, :num_classes]


# ----------------------------------------------------------------------------
# Deterministic backbone stubs (plain-JAX glue; produce correct shapes).
# ----------------------------------------------------------------------------
# TODO(synk): the 12-layer BERT encoder is not implemented; replaced by a
# deterministic embedding lookup + attention-masked mean (the pooler's tanh
# projection itself is fused into the Pallas kernel).
def bert_masked_mean_stub(input_ids, attention_mask, emb_table):
    hidden = emb_table[input_ids]                                   # (B, S, 768)
    mask = attention_mask[..., None].astype(jnp.float32)            # (B, S, 1)
    summed = jnp.sum(hidden * mask, axis=1)
    denom = jnp.clip(jnp.sum(mask, axis=1), 1.0, None)
    return summed / denom                                           # (B, 768)


# TODO(synk): the resnet18 conv trunk is not implemented; replaced by global
# average pooling + a deterministic linear projection to the 512-dim
# penultimate feature space that resnet18's `fc` consumes.
def resnet_feature_stub(image, w_proj, b_proj):
    pooled = jnp.mean(image, axis=(2, 3))                           # (B, 3)
    return pooled @ w_proj + b_proj                                 # (B, 512)


# ----------------------------------------------------------------------------
# Deterministic parameter initialization (shapes per the module __init__).
# ----------------------------------------------------------------------------
def init_params(key, num_classes, vocab_size=1000):
    ks = jax.random.split(key, 12)
    scale = 0.02
    return {
        # head weights (stored as (in, out) for x @ W)
        "Wt": scale * jax.random.normal(ks[0], (768, 256), jnp.float32),
        "bt": jnp.zeros((1, 256), jnp.float32),
        "Wi": scale * jax.random.normal(ks[1], (512, 256), jnp.float32),
        "bi": jnp.zeros((1, 256), jnp.float32),
        "Wf": scale * jax.random.normal(ks[2], (512, 128), jnp.float32),
        "bf": jnp.zeros((1, 128), jnp.float32),
        "Wc": scale * jax.random.normal(ks[3], (128, num_classes), jnp.float32),
        "bc": jnp.zeros((1, num_classes), jnp.float32),
        # backbone stub parameters
        "emb_table": scale * jax.random.normal(ks[4], (vocab_size, 768), jnp.float32),
        "w_pool": scale * jax.random.normal(ks[5], (768, 768), jnp.float32),
        "b_pool": jnp.zeros((768,), jnp.float32),
        "w_proj": scale * jax.random.normal(ks[6], (3, 512), jnp.float32),
        "b_proj": jnp.zeros((512,), jnp.float32),
    }


def multimodal_classifier_forward(input_ids, attention_mask, image,
                                  params, folded, num_classes):
    mean = bert_masked_mean_stub(input_ids, attention_mask,
                                 params["emb_table"])               # (B, 768)
    img_feat = resnet_feature_stub(image, params["w_proj"],
                                   params["b_proj"])                # (B, 512)
    return multimodal_head(mean, img_feat, folded, num_classes)     # (B, C)


# ----------------------------------------------------------------------------
# Pure-JAX f32 reference of the (unfolded) head for a correctness check.
# ----------------------------------------------------------------------------
def head_reference(mean, img_feat, p):
    pooler = jnp.tanh(mean @ p["w_pool"] + p["b_pool"])
    text = pooler @ p["Wt"] + p["bt"]
    img = img_feat @ p["Wi"] + p["bi"]
    combined = jnp.concatenate([text, img], axis=-1)
    x = jnp.maximum(combined @ p["Wf"] + p["bf"], 0.0)
    return x @ p["Wc"] + p["bc"]


if __name__ == "__main__":
    B, S, H, W = 2, 8, 16, 16
    NUM_CLASSES = 10
    VOCAB = 1000

    key = jax.random.PRNGKey(0)
    k_param, k_ids, k_img = jax.random.split(key, 3)

    params = init_params(k_param, NUM_CLASSES, vocab_size=VOCAB)

    # Weight fold / padding / bf16 cast happens ONCE here (load time),
    # outside the jitted forward path.
    folded = fold_head_params(params)

    input_ids = jax.random.randint(k_ids, (B, S), 0, VOCAB, dtype=jnp.int32)
    attention_mask = jnp.ones((B, S), dtype=jnp.int32)
    image = jax.random.normal(k_img, (B, 3, H, W), dtype=jnp.float32)  # NCHW

    fwd = jax.jit(functools.partial(multimodal_classifier_forward,
                                    num_classes=NUM_CLASSES))
    out = jax.block_until_ready(fwd(input_ids, attention_mask, image,
                                    params, folded))
    assert out.shape == (B, NUM_CLASSES), out.shape

    # Cross-check the fused/folded bf16-MXU Pallas head against a pure-JAX
    # f32 reference (tolerance relaxed for bf16 operands).
    mean = bert_masked_mean_stub(input_ids, attention_mask, params["emb_table"])
    img_feat = resnet_feature_stub(image, params["w_proj"], params["b_proj"])
    ref = head_reference(mean, img_feat, params)
    assert jnp.allclose(out, ref, atol=1e-2, rtol=1e-2), \
        float(jnp.max(jnp.abs(out - ref)))

    print("KERNEL_OK")
</pallas_src>

<mosaic_0001>
module attributes {stable_mosaic.version = 11 : i64} {
  func.func @head_kernel(%arg0: i32, %arg1: memref<8x768xbf16, #tpu.memory_space<vmem>>, %arg2: memref<8x512xbf16, #tpu.memory_space<vmem>>, %arg3: memref<768x768xbf16, #tpu.memory_space<vmem>>, %arg4: memref<1x768xf32, #tpu.memory_space<vmem>>, %arg5: memref<768x128xbf16, #tpu.memory_space<vmem>>, %arg6: memref<512x128xbf16, #tpu.memory_space<vmem>>, %arg7: memref<1x128xf32, #tpu.memory_space<vmem>>, %arg8: memref<128x128xbf16, #tpu.memory_space<vmem>>, %arg9: memref<1x128xf32, #tpu.memory_space<vmem>>, %arg10: memref<8x128xf32, #tpu.memory_space<vmem>>) attributes {dimension_semantics = [#tpu.dimension_semantics<parallel>], iteration_bounds = array<i64: 1>, scalar_prefetch = 0 : i64, scratch_operands = 0 : i64, tpu.core_type = #tpu.core_type<tc>, window_params = [{transform_indices = @transform_0, window_bounds = array<i64: 8, 768>}, {transform_indices = @transform_1, window_bounds = array<i64: 8, 512>}, {pipeline_mode = #tpu.pipeline_mode<synchronous>, transform_indices = @transform_2, window_bounds = array<i64: 768, 768>}, {pipeline_mode = #tpu.pipeline_mode<synchronous>, transform_indices = @transform_3, window_bounds = array<i64: 1, 768>}, {pipeline_mode = #tpu.pipeline_mode<synchronous>, transform_indices = @transform_4, window_bounds = array<i64: 768, 128>}, {pipeline_mode = #tpu.pipeline_mode<synchronous>, transform_indices = @transform_5, window_bounds = array<i64: 512, 128>}, {pipeline_mode = #tpu.pipeline_mode<synchronous>, transform_indices = @transform_6, window_bounds = array<i64: 1, 128>}, {pipeline_mode = #tpu.pipeline_mode<synchronous>, transform_indices = @transform_7, window_bounds = array<i64: 128, 128>}, {pipeline_mode = #tpu.pipeline_mode<synchronous>, transform_indices = @transform_8, window_bounds = array<i64: 1, 128>}, {transform_indices = @transform_9, window_bounds = array<i64: 8, 128>}]} {
    %c0 = arith.constant 0 : index
    %c0_0 = arith.constant 0 : index
    %0 = vector.load %arg1[%c0, %c0_0] : memref<8x768xbf16, #tpu.memory_space<vmem>>, vector<8x768xbf16>
    %c0_1 = arith.constant 0 : index
    %c0_2 = arith.constant 0 : index
    %1 = vector.load %arg3[%c0_1, %c0_2] : memref<768x768xbf16, #tpu.memory_space<vmem>>, vector<768x768xbf16>
    %cst = arith.constant dense<0.000000e+00> : vector<8x768xf32>
    %2 = tpu.matmul %0, %1, %cst {dimension_numbers = #tpu.dot_dimension_numbers<[1], [0], [0], [1], [0, 0, 1, 1], [], []>} : vector<8x768xbf16>, vector<768x768xbf16>, vector<8x768xf32> -> vector<8x768xf32>
    %c0_3 = arith.constant 0 : index
    %c0_4 = arith.constant 0 : index
    %3 = vector.load %arg4[%c0_3, %c0_4] : memref<1x768xf32, #tpu.memory_space<vmem>>, vector<1x768xf32>
    %4 = vector.broadcast %3 : vector<1x768xf32> to vector<8x768xf32>
    %5 = arith.addf %2, %4 : vector<8x768xf32>
    %6 = math.tanh %5 : vector<8x768xf32>
    %7 = arith.truncf %6 : vector<8x768xf32> to vector<8x768xbf16>
    %c0_5 = arith.constant 0 : index
    %c0_6 = arith.constant 0 : index
    %8 = vector.load %arg5[%c0_5, %c0_6] : memref<768x128xbf16, #tpu.memory_space<vmem>>, vector<768x128xbf16>
    %cst_7 = arith.constant dense<0.000000e+00> : vector<8x128xf32>
    %9 = tpu.matmul %7, %8, %cst_7 {dimension_numbers = #tpu.dot_dimension_numbers<[1], [0], [0], [1], [0, 0, 1, 1], [], []>} : vector<8x768xbf16>, vector<768x128xbf16>, vector<8x128xf32> -> vector<8x128xf32>
    %c0_8 = arith.constant 0 : index
    %c0_9 = arith.constant 0 : index
    %10 = vector.load %arg2[%c0_8, %c0_9] : memref<8x512xbf16, #tpu.memory_space<vmem>>, vector<8x512xbf16>
    %c0_10 = arith.constant 0 : index
    %c0_11 = arith.constant 0 : index
    %11 = vector.load %arg6[%c0_10, %c0_11] : memref<512x128xbf16, #tpu.memory_space<vmem>>, vector<512x128xbf16>
    %cst_12 = arith.constant dense<0.000000e+00> : vector<8x128xf32>
    %12 = tpu.matmul %10, %11, %cst_12 {dimension_numbers = #tpu.dot_dimension_numbers<[1], [0], [0], [1], [0, 0, 1, 1], [], []>} : vector<8x512xbf16>, vector<512x128xbf16>, vector<8x128xf32> -> vector<8x128xf32>
    %13 = arith.addf %9, %12 : vector<8x128xf32>
    %c0_13 = arith.constant 0 : index
    %c0_14 = arith.constant 0 : index
    %14 = vector.load %arg7[%c0_13, %c0_14] : memref<1x128xf32, #tpu.memory_space<vmem>>, vector<1x128xf32>
    %15 = vector.broadcast %14 : vector<1x128xf32> to vector<8x128xf32>
    %16 = arith.addf %13, %15 : vector<8x128xf32>
    %cst_15 = arith.constant 0.000000e+00 : f32
    %17 = vector.broadcast %cst_15 : f32 to vector<8x128xf32>
    %18 = arith.maximumf %16, %17 : vector<8x128xf32>
    %19 = arith.truncf %18 : vector<8x128xf32> to vector<8x128xbf16>
    %c0_16 = arith.constant 0 : index
    %c0_17 = arith.constant 0 : index
    %20 = vector.load %arg8[%c0_16, %c0_17] : memref<128x128xbf16, #tpu.memory_space<vmem>>, vector<128x128xbf16>
    %cst_18 = arith.constant dense<0.000000e+00> : vector<8x128xf32>
    %21 = tpu.matmul %19, %20, %cst_18 {dimension_numbers = #tpu.dot_dimension_numbers<[1], [0], [0], [1], [0, 0, 1, 1], [], []>} : vector<8x128xbf16>, vector<128x128xbf16>, vector<8x128xf32> -> vector<8x128xf32>
    %c0_19 = arith.constant 0 : index
    %c0_20 = arith.constant 0 : index
    %22 = vector.load %arg9[%c0_19, %c0_20] : memref<1x128xf32, #tpu.memory_space<vmem>>, vector<1x128xf32>
    %23 = vector.broadcast %22 : vector<1x128xf32> to vector<8x128xf32>
    %24 = arith.addf %21, %23 : vector<8x128xf32>
    %c0_21 = arith.constant 0 : index
    %c0_22 = arith.constant 0 : index
    %25 = vector.load %arg10[%c0_21, %c0_22] : memref<8x128xf32, #tpu.memory_space<vmem>>, vector<8x128xf32>
    tpu.vector_store %arg10[%c0_21, %c0_22], %24 {strides = array<i32>} : memref<8x128xf32, #tpu.memory_space<vmem>>, vector<8x128xf32>,
    return
  }
  func.func @transform_0(%arg0: i32) -> (i32, i32) {
    %c0_i32 = arith.constant 0 : i32
    %c0_i32_0 = arith.constant 0 : i32
    return %arg0, %c0_i32 : i32, i32
  }
  func.func @transform_1(%arg0: i32) -> (i32, i32) {
    %c0_i32 = arith.constant 0 : i32
    %c0_i32_0 = arith.constant 0 : i32
    return %arg0, %c0_i32 : i32, i32
  }
  func.func @transform_2(%arg0: i32) -> (i32, i32) {
    %c0_i32 = arith.constant 0 : i32
    %c0_i32_0 = arith.constant 0 : i32
    %c0_i32_1 = arith.constant 0 : i32
    return %c0_i32, %c0_i32_0 : i32, i32
  }
  func.func @transform_3(%arg0: i32) -> (i32, i32) {
    %c0_i32 = arith.constant 0 : i32
    %c0_i32_0 = arith.constant 0 : i32
    %c0_i32_1 = arith.constant 0 : i32
    return %c0_i32, %c0_i32_0 : i32, i32
  }
  func.func @transform_4(%arg0: i32) -> (i32, i32) {
    %c0_i32 = arith.constant 0 : i32
    %c0_i32_0 = arith.constant 0 : i32
    %c0_i32_1 = arith.constant 0 : i32
    return %c0_i32, %c0_i32_0 : i32, i32
  }
  func.func @transform_5(%arg0: i32) -> (i32, i32) {
    %c0_i32 = arith.constant 0 : i32
    %c0_i32_0 = arith.constant 0 : i32
    %c0_i32_1 = arith.constant 0 : i32
    return %c0_i32, %c0_i32_0 : i32, i32
  }
  func.func @transform_6(%arg0: i32) -> (i32, i32) {
    %c0_i32 = arith.constant 0 : i32
    %c0_i32_0 = arith.constant 0 : i32
    %c0_i32_1 = arith.constant 0 : i32
    return %c0_i32, %c0_i32_0 : i32, i32
  }
  func.func @transform_7(%arg0: i32) -> (i32, i32) {
    %c0_i32 = arith.constant 0 : i32
    %c0_i32_0 = arith.constant 0 : i32
    %c0_i32_1 = arith.constant 0 : i32
    return %c0_i32, %c0_i32_0 : i32, i32
  }
  func.func @transform_8(%arg0: i32) -> (i32, i32) {
    %c0_i32 = arith.constant 0 : i32
    %c0_i32_0 = arith.constant 0 : i32
    %c0_i32_1 = arith.constant 0 : i32
    return %c0_i32, %c0_i32_0 : i32, i32
  }
  func.func @transform_9(%arg0: i32) -> (i32, i32) {
    %c0_i32 = arith.constant 0 : i32
    %c0_i32_0 = arith.constant 0 : i32
    return %arg0, %c0_i32 : i32, i32
  }
}

</mosaic_0001>

<llo_original>
// kernel: multimodal_classifier_forward.1
$region0: #{multimodal_classifier_forward.1}
  #allocation0 [shape = 'u32[]', space=smem, size = 0x4, offset = 0x4, fixed_abs, tag = 'smem constant byte address 0x4 - core index']
  #allocation1 [shape = 'u32[144,128]{1,0:T(1,128)}', space=vmem, size = 0x12000, scoped, tag = 'internal scratch']
  %s0 = inlined_call_operand.vmem [shape: bf16[8,768], index: 0, kind: input, shape index: {}]
  %s1 = inlined_call_operand.vmem [shape: bf16[8,512], index: 1, kind: input, shape index: {}]
  %s2 = inlined_call_operand.hbm [shape: bf16[768,768], index: 2, kind: input, shape index: {}]
  %s3 = inlined_call_operand.hbm [shape: f32[1,768], index: 3, kind: input, shape index: {}]
  %s4 = inlined_call_operand.hbm [shape: bf16[768,128], index: 4, kind: input, shape index: {}]
  %s5 = inlined_call_operand.hbm [shape: bf16[512,128], index: 5, kind: input, shape index: {}]
  %s6 = inlined_call_operand.hbm [shape: f32[1,128], index: 6, kind: input, shape index: {}]
  %s7 = inlined_call_operand.hbm [shape: bf16[128,128], index: 7, kind: input, shape index: {}]
  %s8 = inlined_call_operand.hbm [shape: f32[1,128], index: 8, kind: input, shape index: {}]
  %s9 = inlined_call_operand.vmem [shape: f32[8,128], index: 9, kind: output, shape index: {}]
  %s10 = sld [smem:[#allocation0]]
  $region74: #{multimodal_classifier_forward.1} parent=0
    _
  %s12 = ssub.s32 1, %s10
  %s13 = scalar_select 0, %s12, %s10
  $region1: #{multimodal_classifier_forward.1} parent=0
    #allocation2 [shape = 'u8[1179648]{0}', space=vmem, size = 0x120000, scoped, tag = 'input window, operand 2, single buffered']
    #allocation3 [shape = 's32[1]{0}', space=sflag, size = 0x4, scoped, tag = 'scoped memory for multimodal_classifier_forward.1']
    #allocation4 [shape = 'u8[3072]{0}', space=vmem, size = 0xc00, scoped, tag = 'input window, operand 3, single buffered']
    #allocation5 [shape = 's32[1]{0}', space=sflag, size = 0x4, scoped, tag = 'scoped memory for multimodal_classifier_forward.1']
    #allocation6 [shape = 'u8[196608]{0}', space=vmem, size = 0x30000, scoped, tag = 'input window, operand 4, single buffered']
    #allocation7 [shape = 'u8[131072]{0}', space=vmem, size = 0x20000, scoped, tag = 'input window, operand 5, single buffered']
    #allocation8 [shape = 's32[1]{0}', space=sflag, size = 0x4, scoped, tag = 'scoped memory for multimodal_classifier_forward.1']
    #allocation9 [shape = 'u8[512]{0}', space=vmem, size = 0x400, scoped, tag = 'input window, operand 6, single buffered']
    #allocation10 [shape = 'u8[32768]{0}', space=vmem, size = 0x8000, scoped, tag = 'input window, operand 7, single buffered']
    #allocation11 [shape = 's32[1]{0}', space=sflag, size = 0x4, scoped, tag = 'scoped memory for multimodal_classifier_forward.1']
    #allocation12 [shape = 'u8[512]{0}', space=vmem, size = 0x400, scoped, tag = 'input window, operand 8, single buffered']
    %14 = vsyncpa [#allocation3], 0
    %15 = vsyncpa [#allocation5], 0
    %16 = vsyncpa [#allocation8], 0
    %17 = vsyncpa [#allocation11], 0
    // Predicated region
    $region2: #{multimodal_classifier_forward.1} parent=1 // pred_check
      _
    $region3: #{multimodal_classifier_forward.1} parent=1 // pred_check_branch
      %19 = sbr.rel (0) target = $region5
    $region4: #{multimodal_classifier_forward.1} parent=1 // pred_region
      _
    $region5: #{multimodal_classifier_forward.1} parent=1 // pred_fallthru
      _
    // Predicated region
    $region6: #{multimodal_classifier_forward.1} parent=1 // pred_check
      _
    $region7: #{multimodal_classifier_forward.1} parent=1 // pred_check_branch
      %21 = sbr.rel (0) target = $region9
    $region8: #{multimodal_classifier_forward.1} parent=1 // pred_region
      _
    $region9: #{multimodal_classifier_forward.1} parent=1 // pred_fallthru
      _
    // Predicated region
    $region10: #{multimodal_classifier_forward.1} parent=1 // pred_check
      _
    $region11: #{multimodal_classifier_forward.1} parent=1 // pred_check_branch
      %23 = sbr.rel (0) target = $region13
    $region12: #{multimodal_classifier_forward.1} parent=1 // pred_region
      %s25 = ssub.s32 36864, 36864
      %26 = vsyncadd [#allocation3], %s25
      %s27 = sshll.u32 [#allocation2], 4
      %s28 = int_to_ptr.vmem [resolvable:$true] %s27
      %33 = dma.hbm_to_vmem [thread:$0]  %s2, 36864, %s28, [#allocation3], 384, 384, 24
    $region13: #{multimodal_classifier_forward.1} parent=1 // pred_fallthru
      _
    // Predicated region
    $region14: #{multimodal_classifier_forward.1} parent=1 // pred_check
      _
    $region15: #{multimodal_classifier_forward.1} parent=1 // pred_check_branch
      %35 = sbr.rel (0) target = $region17
    $region16: #{multimodal_classifier_forward.1} parent=1 // pred_region
      %s37 = ssub.s32 96, 96
      %38 = vsyncadd [#allocation5], %s37
      %s40 = sshll.u32 [#allocation4], 4
      %s41 = int_to_ptr.vmem [resolvable:$true] %s40
      %43 = dma.hbm_to_vmem [thread:$0]  %s3, 96, %s41, [#allocation5]
    $region17: #{multimodal_classifier_forward.1} parent=1 // pred_fallthru
      _
    // Predicated region
    $region18: #{multimodal_classifier_forward.1} parent=1 // pred_check
      _
    $region19: #{multimodal_classifier_forward.1} parent=1 // pred_check_branch
      %45 = sbr.rel (0) target = $region21
    $region20: #{multimodal_classifier_forward.1} parent=1 // pred_region
      %s47 = ssub.s32 6144, 6144
      %48 = vsyncadd [#allocation5], %s47
      %s49 = sshll.u32 [#allocation6], 4
      %s50 = int_to_ptr.vmem [resolvable:$true] %s49
      %55 = dma.hbm_to_vmem [thread:$0]  %s4, 6144, %s50, [#allocation5], 64, 64, 4
    $region21: #{multimodal_classifier_forward.1} parent=1 // pred_fallthru
      _
    // Predicated region
    $region22: #{multimodal_classifier_forward.1} parent=1 // pred_check
      _
    $region23: #{multimodal_classifier_forward.1} parent=1 // pred_check_branch
      %57 = sbr.rel (0) target = $region25
    $region24: #{multimodal_classifier_forward.1} parent=1 // pred_region
      %s59 = ssub.s32 4096, 4096
      %60 = vsyncadd [#allocation8], %s59
      %s61 = sshll.u32 [#allocation7], 4
      %s62 = int_to_ptr.vmem [resolvable:$true] %s61
      %67 = dma.hbm_to_vmem [thread:$0]  %s5, 4096, %s62, [#allocation8], 64, 64, 4
    $region25: #{multimodal_classifier_forward.1} parent=1 // pred_fallthru
      _
    // Predicated region
    $region26: #{multimodal_classifier_forward.1} parent=1 // pred_check
      _
    $region27: #{multimodal_classifier_forward.1} parent=1 // pred_check_branch
      %69 = sbr.rel (0) target = $region29
    $region28: #{multimodal_classifier_forward.1} parent=1 // pred_region
      %s71 = ssub.s32 16, 16
      %72 = vsyncadd [#allocation8], %s71
      %s74 = sshll.u32 [#allocation9], 4
      %s75 = int_to_ptr.vmem [resolvable:$true] %s74
      %77 = dma.hbm_to_vmem [thread:$0]  %s6, 16, %s75, [#allocation8]
    $region29: #{multimodal_classifier_forward.1} parent=1 // pred_fallthru
      _
    // Predicated region
    $region30: #{multimodal_classifier_forward.1} parent=1 // pred_check
      _
    $region31: #{multimodal_classifier_forward.1} parent=1 // pred_check_branch
      %79 = sbr.rel (0) target = $region33
    $region32: #{multimodal_classifier_forward.1} parent=1 // pred_region
      %s81 = ssub.s32 1024, 1024
      %82 = vsyncadd [#allocation11], %s81
      %s83 = sshll.u32 [#allocation10], 4
      %s84 = int_to_ptr.vmem [resolvable:$true] %s83
      %89 = dma.hbm_to_vmem [thread:$0]  %s7, 1024, %s84, [#allocation11], 64, 64, 4
    $region33: #{multimodal_classifier_forward.1} parent=1 // pred_fallthru
      _
    // Predicated region
    $region34: #{multimodal_classifier_forward.1} parent=1 // pred_check
      _
    $region35: #{multimodal_classifier_forward.1} parent=1 // pred_check_branch
      %91 = sbr.rel (0) target = $region37
    $region36: #{multimodal_classifier_forward.1} parent=1 // pred_region
      %s93 = ssub.s32 16, 16
      %94 = vsyncadd [#allocation11], %s93
      %s96 = sshll.u32 [#allocation12], 4
      %s97 = int_to_ptr.vmem [resolvable:$true] %s96
      %99 = dma.hbm_to_vmem [thread:$0]  %s8, 16, %s97, [#allocation11]
    $region37: #{multimodal_classifier_forward.1} parent=1 // pred_fallthru
      _
    // Predicated region
    $region38: #{multimodal_classifier_forward.1} parent=1 // pred_check
      _
    $region39: #{multimodal_classifier_forward.1} parent=1 // pred_check_branch
      %101 = sbr.rel (0) target = $region41
    $region40: #{multimodal_classifier_forward.1} parent=1 // pred_region
      %102 = dma.done [#allocation3], 36864
    $region41: #{multimodal_classifier_forward.1} parent=1 // pred_fallthru
      _
    // Predicated region
    $region42: #{multimodal_classifier_forward.1} parent=1 // pred_check
      _
    $region43: #{multimodal_classifier_forward.1} parent=1 // pred_check_branch
      %104 = sbr.rel (0) target = $region45
    $region44: #{multimodal_classifier_forward.1} parent=1 // pred_region
      %105 = dma.done [#allocation5], 96
    $region45: #{multimodal_classifier_forward.1} parent=1 // pred_fallthru
      _
    // Predicated region
    $region46: #{multimodal_classifier_forward.1} parent=1 // pred_check
      _
    $region47: #{multimodal_classifier_forward.1} parent=1 // pred_check_branch
      %107 = sbr.rel (0) target = $region49
    $region48: #{multimodal_classifier_forward.1} parent=1 // pred_region
      %108 = dma.done [#allocation5], 6144
    $region49: #{multimodal_classifier_forward.1} parent=1 // pred_fallthru
      _
    // Predicated region
    $region50: #{multimodal_classifier_forward.1} parent=1 // pred_check
      _
    $region51: #{multimodal_classifier_forward.1} parent=1 // pred_check_branch
      %110 = sbr.rel (0) target = $region53
    $region52: #{multimodal_classifier_forward.1} parent=1 // pred_region
      %111 = dma.done [#allocation8], 4096
    $region53: #{multimodal_classifier_forward.1} parent=1 // pred_fallthru
      _
    // Predicated region
    $region54: #{multimodal_classifier_forward.1} parent=1 // pred_check
      _
    $region55: #{multimodal_classifier_forward.1} parent=1 // pred_check_branch
      %113 = sbr.rel (0) target = $region57
    $region56: #{multimodal_classifier_forward.1} parent=1 // pred_region
      %114 = dma.done [#allocation8], 16
    $region57: #{multimodal_classifier_forward.1} parent=1 // pred_fallthru
      _
    // Predicated region
    $region58: #{multimodal_classifier_forward.1} parent=1 // pred_check
      _
    $region59: #{multimodal_classifier_forward.1} parent=1 // pred_check_branch
      %116 = sbr.rel (0) target = $region61
    $region60: #{multimodal_classifier_forward.1} parent=1 // pred_region
      %117 = dma.done [#allocation11], 1024
    $region61: #{multimodal_classifier_forward.1} parent=1 // pred_fallthru
      _
    // Predicated region
    $region62: #{multimodal_classifier_forward.1} parent=1 // pred_check
      _
    $region63: #{multimodal_classifier_forward.1} parent=1 // pred_check_branch
      %119 = sbr.rel (0) target = $region65
    $region64: #{multimodal_classifier_forward.1} parent=1 // pred_region
      %120 = dma.done [#allocation11], 16
    $region65: #{multimodal_classifier_forward.1} parent=1 // pred_fallthru
      _
    %v122 = vld [vmem:[%s0] sm:$0xff]
    %v123 = vld [vmem:[%s0 + $0x8] sm:$0xff]
    %v124 = vld [vmem:[%s0 + $0x10] sm:$0xff]
    %v125 = vld [vmem:[#allocation2] sm:$0xff]
    %v126 = vld [vmem:[#allocation2 + $0x8] sm:$0xff]
    %v127 = vld [vmem:[#allocation2 + $0x10] sm:$0xff]
    %v128 = vld [vmem:[#allocation2 + $0x18] sm:$0xff]
    %v129 = vld [vmem:[#allocation2 + $0x20] sm:$0xff]
    %v130 = vld [vmem:[#allocation2 + $0x28] sm:$0xff]
    %v131 = vld [vmem:[#allocation2 + $0x30] sm:$0xff]
    %v132 = vld [vmem:[#allocation2 + $0x38] sm:$0xff]
    %v133 = vld [vmem:[#allocation2 + $0x40] sm:$0xff]
    %v134 = vld [vmem:[#allocation2 + $0x48] sm:$0xff]
    %v135 = vld [vmem:[#allocation2 + $0x50] sm:$0xff]
    %v136 = vld [vmem:[#allocation2 + $0x58] sm:$0xff]
    %v137 = vld [vmem:[#allocation2 + $0x60] sm:$0xff]
    %v138 = vld [vmem:[#allocation2 + $0x68] sm:$0xff]
    %v139 = vld [vmem:[#allocation2 + $0x70] sm:$0xff]
    %v140 = vld [vmem:[#allocation2 + $0x78] sm:$0xff]
    %v141 = vld [vmem:[#allocation2 + $0x80] sm:$0xff]
    %v142 = vld [vmem:[#allocation2 + $0x88] sm:$0xff]
    %v143 = vld [vmem:[#allocation2 + $0x90] sm:$0xff]
    %v144 = vld [vmem:[#allocation2 + $0x98] sm:$0xff]
    %v145 = vld [vmem:[#allocation2 + $0xa0] sm:$0xff]
    %v146 = vld [vmem:[#allocation2 + $0xa8] sm:$0xff]
    %v147 = vld [vmem:[#allocation2 + $0xb0] sm:$0xff]
    %v148 = vld [vmem:[#allocation2 + $0xb8] sm:$0xff]
    %v149 = vld [vmem:[#allocation2 + $0xc0] sm:$0xff]
    %v150 = vld [vmem:[#allocation2 + $0xc8] sm:$0xff]
    %v151 = vld [vmem:[#allocation2 + $0xd0] sm:$0xff]
    %v152 = vld [vmem:[#allocation2 + $0xd8] sm:$0xff]
    %v153 = vld [vmem:[#allocation2 + $0xe0] sm:$0xff]
    %v154 = vld [vmem:[#allocation2 + $0xe8] sm:$0xff]
    %v155 = vld [vmem:[#allocation2 + $0xf0] sm:$0xff]
    %v156 = vld [vmem:[#allocation2 + $0xf8] sm:$0xff]
    %v157 = vld [vmem:[#allocation2 + $0x100] sm:$0xff]
    %v158 = vld [vmem:[#allocation2 + $0x108] sm:$0xff]
    %v159 = vld [vmem:[#allocation2 + $0x110] sm:$0xff]
    %v160 = vld [vmem:[#allocation2 + $0x118] sm:$0xff]
    %v161 = vld [vmem:[#allocation2 + $0x120] sm:$0xff]
    %v162 = vld [vmem:[#allocation2 + $0x128] sm:$0xff]
    %v163 = vld [vmem:[#allocation2 + $0x130] sm:$0xff]
    %v164 = vld [vmem:[#allocation2 + $0x138] sm:$0xff]
    %v165 = vld [vmem:[#allocation2 + $0x140] sm:$0xff]
    %v166 = vld [vmem:[#allocation2 + $0x148] sm:$0xff]
    %v167 = vld [vmem:[#allocation2 + $0x150] sm:$0xff]
    %v168 = vld [vmem:[#allocation2 + $0x158] sm:$0xff]
    %v169 = vld [vmem:[#allocation2 + $0x160] sm:$0xff]
    %v170 = vld [vmem:[#allocation2 + $0x168] sm:$0xff]
    %v171 = vld [vmem:[#allocation2 + $0x170] sm:$0xff]
    %v172 = vld [vmem:[#allocation2 + $0x178] sm:$0xff]
    %v173 = vld [vmem:[#allocation2 + $0x180] sm:$0xff]
    %v174 = vld [vmem:[#allocation2 + $0x188] sm:$0xff]
    %v175 = vld [vmem:[#allocation2 + $0x190] sm:$0xff]
    %v176 = vld [vmem:[#allocation2 + $0x198] sm:$0xff]
    %v177 = vld [vmem:[#allocation2 + $0x1a0] sm:$0xff]
    %v178 = vld [vmem:[#allocation2 + $0x1a8] sm:$0xff]
    %v179 = vld [vmem:[#allocation2 + $0x1b0] sm:$0xff]
    %v180 = vld [vmem:[#allocation2 + $0x1b8] sm:$0xff]
    %v181 = vld [vmem:[#allocation2 + $0x1c0] sm:$0xff]
    %v182 = vld [vmem:[#allocation2 + $0x1c8] sm:$0xff]
    %v183 = vld [vmem:[#allocation2 + $0x1d0] sm:$0xff]
    %v184 = vld [vmem:[#allocation2 + $0x1d8] sm:$0xff]
    %v185 = vld [vmem:[#allocation2 + $0x1e0] sm:$0xff]
    %v186 = vld [vmem:[#allocation2 + $0x1e8] sm:$0xff]
    %v187 = vld [vmem:[#allocation2 + $0x1f0] sm:$0xff]
    %v188 = vld [vmem:[#allocation2 + $0x1f8] sm:$0xff]
    %v189 = vld [vmem:[#allocation2 + $0x200] sm:$0xff]
    %v190 = vld [vmem:[#allocation2 + $0x208] sm:$0xff]
    %v191 = vld [vmem:[#allocation2 + $0x210] sm:$0xff]
    %v192 = vld [vmem:[#allocation2 + $0x218] sm:$0xff]
    %v193 = vld [vmem:[#allocation2 + $0x220] sm:$0xff]
    %v194 = vld [vmem:[#allocation2 + $0x228] sm:$0xff]
    %v195 = vld [vmem:[#allocation2 + $0x230] sm:$0xff]
    %v196 = vld [vmem:[#allocation2 + $0x238] sm:$0xff]
    %v197 = vld [vmem:[#allocation2 + $0x240] sm:$0xff]
    %v198 = vld [vmem:[#allocation2 + $0x248] sm:$0xff]
    %v199 = vld [vmem:[#allocation2 + $0x250] sm:$0xff]
    %v200 = vld [vmem:[#allocation2 + $0x258] sm:$0xff]
    %v201 = vld [vmem:[#allocation2 + $0x260] sm:$0xff]
    %v202 = vld [vmem:[#allocation2 + $0x268] sm:$0xff]
    %v203 = vld [vmem:[#allocation2 + $0x270] sm:$0xff]
    %v204 = vld [vmem:[#allocation2 + $0x278] sm:$0xff]
    %v205 = vld [vmem:[#allocation2 + $0x280] sm:$0xff]
    %v206 = vld [vmem:[#allocation2 + $0x288] sm:$0xff]
    %v207 = vld [vmem:[#allocation2 + $0x290] sm:$0xff]
    %v208 = vld [vmem:[#allocation2 + $0x298] sm:$0xff]
    %v209 = vld [vmem:[#allocation2 + $0x2a0] sm:$0xff]
    %v210 = vld [vmem:[#allocation2 + $0x2a8] sm:$0xff]
    %v211 = vld [vmem:[#allocation2 + $0x2b0] sm:$0xff]
    %v212 = vld [vmem:[#allocation2 + $0x2b8] sm:$0xff]
    %v213 = vld [vmem:[#allocation2 + $0x2c0] sm:$0xff]
    %v214 = vld [vmem:[#allocation2 + $0x2c8] sm:$0xff]
    %v215 = vld [vmem:[#allocation2 + $0x2d0] sm:$0xff]
    %v216 = vld [vmem:[#allocation2 + $0x2d8] sm:$0xff]
    %v217 = vld [vmem:[#allocation2 + $0x2e0] sm:$0xff]
    %v218 = vld [vmem:[#allocation2 + $0x2e8] sm:$0xff]
    %v219 = vld [vmem:[#allocation2 + $0x2f0] sm:$0xff]
    %v220 = vld [vmem:[#allocation2 + $0x2f8] sm:$0xff]
    %v221 = vld [vmem:[#allocation2 + $0x300] sm:$0xff]
    %v222 = vld [vmem:[#allocation2 + $0x308] sm:$0xff]
    %v223 = vld [vmem:[#allocation2 + $0x310] sm:$0xff]
    %v224 = vld [vmem:[#allocation2 + $0x318] sm:$0xff]
    %v225 = vld [vmem:[#allocation2 + $0x320] sm:$0xff]
    %v226 = vld [vmem:[#allocation2 + $0x328] sm:$0xff]
    %v227 = vld [vmem:[#allocation2 + $0x330] sm:$0xff]
    %v228 = vld [vmem:[#allocation2 + $0x338] sm:$0xff]
    %v229 = vld [vmem:[#allocation2 + $0x340] sm:$0xff]
    %v230 = vld [vmem:[#allocation2 + $0x348] sm:$0xff]
    %v231 = vld [vmem:[#allocation2 + $0x350] sm:$0xff]
    %v232 = vld [vmem:[#allocation2 + $0x358] sm:$0xff]
    %v233 = vld [vmem:[#allocation2 + $0x360] sm:$0xff]
    %v234 = vld [vmem:[#allocation2 + $0x368] sm:$0xff]
    %v235 = vld [vmem:[#allocation2 + $0x370] sm:$0xff]
    %v236 = vld [vmem:[#allocation2 + $0x378] sm:$0xff]
    %v237 = vld [vmem:[#allocation2 + $0x380] sm:$0xff]
    %v238 = vld [vmem:[#allocation2 + $0x388] sm:$0xff]
    %v239 = vld [vmem:[#allocation2 + $0x390] sm:$0xff]
    %v240 = vld [vmem:[#allocation2 + $0x398] sm:$0xff]
    %v241 = vld [vmem:[#allocation2 + $0x3a0] sm:$0xff]
    %v242 = vld [vmem:[#allocation2 + $0x3a8] sm:$0xff]
    %v243 = vld [vmem:[#allocation2 + $0x3b0] sm:$0xff]
    %v244 = vld [vmem:[#allocation2 + $0x3b8] sm:$0xff]
    %v245 = vld [vmem:[#allocation2 + $0x3c0] sm:$0xff]
    %v246 = vld [vmem:[#allocation2 + $0x3c8] sm:$0xff]
    %v247 = vld [vmem:[#allocation2 + $0x3d0] sm:$0xff]
    %v248 = vld [vmem:[#allocation2 + $0x3d8] sm:$0xff]
    %v249 = vld [vmem:[#allocation2 + $0x3e0] sm:$0xff]
    %v250 = vld [vmem:[#allocation2 + $0x3e8] sm:$0xff]
    %v251 = vld [vmem:[#allocation2 + $0x3f0] sm:$0xff]
    %v252 = vld [vmem:[#allocation2 + $0x3f8] sm:$0xff]
    %v253 = vld [vmem:[#allocation2 + $0x400] sm:$0xff]
    %v254 = vld [vmem:[#allocation2 + $0x408] sm:$0xff]
    %v255 = vld [vmem:[#allocation2 + $0x410] sm:$0xff]
    %v256 = vld [vmem:[#allocation2 + $0x418] sm:$0xff]
    %v257 = vld [vmem:[#allocation2 + $0x420] sm:$0xff]
    %v258 = vld [vmem:[#allocation2 + $0x428] sm:$0xff]
    %v259 = vld [vmem:[#allocation2 + $0x430] sm:$0xff]
    %v260 = vld [vmem:[#allocation2 + $0x438] sm:$0xff]
    %v261 = vld [vmem:[#allocation2 + $0x440] sm:$0xff]
    %v262 = vld [vmem:[#allocation2 + $0x448] sm:$0xff]
    %v263 = vld [vmem:[#allocation2 + $0x450] sm:$0xff]
    %v264 = vld [vmem:[#allocation2 + $0x458] sm:$0xff]
    %v265 = vld [vmem:[#allocation2 + $0x460] sm:$0xff]
    %v266 = vld [vmem:[#allocation2 + $0x468] sm:$0xff]
    %v267 = vld [vmem:[#allocation2 + $0x470] sm:$0xff]
    %v268 = vld [vmem:[#allocation2 + $0x478] sm:$0xff]
    %v269 = vld [vmem:[#allocation2 + $0x480] sm:$0xff]
    %v270 = vld [vmem:[#allocation2 + $0x488] sm:$0xff]
    %v271 = vld [vmem:[#allocation2 + $0x490] sm:$0xff]
    %v272 = vld [vmem:[#allocation2 + $0x498] sm:$0xff]
    %v273 = vld [vmem:[#allocation2 + $0x4a0] sm:$0xff]
    %v274 = vld [vmem:[#allocation2 + $0x4a8] sm:$0xff]
    %v275 = vld [vmem:[#allocation2 + $0x4b0] sm:$0xff]
    %v276 = vld [vmem:[#allocation2 + $0x4b8] sm:$0xff]
    %v277 = vld [vmem:[#allocation2 + $0x4c0] sm:$0xff]
    %v278 = vld [vmem:[#allocation2 + $0x4c8] sm:$0xff]
    %v279 = vld [vmem:[#allocation2 + $0x4d0] sm:$0xff]
    %v280 = vld [vmem:[#allocation2 + $0x4d8] sm:$0xff]
    %v281 = vld [vmem:[#allocation2 + $0x4e0] sm:$0xff]
    %v282 = vld [vmem:[#allocation2 + $0x4e8] sm:$0xff]
    %v283 = vld [vmem:[#allocation2 + $0x4f0] sm:$0xff]
    %v284 = vld [vmem:[#allocation2 + $0x4f8] sm:$0xff]
    %v285 = vld [vmem:[#allocation2 + $0x500] sm:$0xff]
    %v286 = vld [vmem:[#allocation2 + $0x508] sm:$0xff]
    %v287 = vld [vmem:[#allocation2 + $0x510] sm:$0xff]
    %v288 = vld [vmem:[#allocation2 + $0x518] sm:$0xff]
    %v289 = vld [vmem:[#allocation2 + $0x520] sm:$0xff]
    %v290 = vld [vmem:[#allocation2 + $0x528] sm:$0xff]
    %v291 = vld [vmem:[#allocation2 + $0x530] sm:$0xff]
    %v292 = vld [vmem:[#allocation2 + $0x538] sm:$0xff]
    %v293 = vld [vmem:[#allocation2 + $0x540] sm:$0xff]
    %v294 = vld [vmem:[#allocation2 + $0x548] sm:$0xff]
    %v295 = vld [vmem:[#allocation2 + $0x550] sm:$0xff]
    %v296 = vld [vmem:[#allocation2 + $0x558] sm:$0xff]
    %v297 = vld [vmem:[#allocation2 + $0x560] sm:$0xff]
    %v298 = vld [vmem:[#allocation2 + $0x568] sm:$0xff]
    %v299 = vld [vmem:[#allocation2 + $0x570] sm:$0xff]
    %v300 = vld [vmem:[#allocation2 + $0x578] sm:$0xff]
    %v301 = vld [vmem:[#allocation2 + $0x580] sm:$0xff]
    %v302 = vld [vmem:[#allocation2 + $0x588] sm:$0xff]
    %v303 = vld [vmem:[#allocation2 + $0x590] sm:$0xff]
    %v304 = vld [vmem:[#allocation2 + $0x598] sm:$0xff]
    %v305 = vld [vmem:[#allocation2 + $0x5a0] sm:$0xff]
    %v306 = vld [vmem:[#allocation2 + $0x5a8] sm:$0xff]
    %v307 = vld [vmem:[#allocation2 + $0x5b0] sm:$0xff]
    %v308 = vld [vmem:[#allocation2 + $0x5b8] sm:$0xff]
    %v309 = vld [vmem:[#allocation2 + $0x5c0] sm:$0xff]
    %v310 = vld [vmem:[#allocation2 + $0x5c8] sm:$0xff]
    %v311 = vld [vmem:[#allocation2 + $0x5d0] sm:$0xff]
    %v312 = vld [vmem:[#allocation2 + $0x5d8] sm:$0xff]
    %v313 = vld [vmem:[#allocation2 + $0x5e0] sm:$0xff]
    %v314 = vld [vmem:[#allocation2 + $0x5e8] sm:$0xff]
    %v315 = vld [vmem:[#allocation2 + $0x5f0] sm:$0xff]
    %v316 = vld [vmem:[#allocation2 + $0x5f8] sm:$0xff]
    %v317 = vld [vmem:[#allocation2 + $0x600] sm:$0xff]
    %v318 = vld [vmem:[#allocation2 + $0x608] sm:$0xff]
    %v319 = vld [vmem:[#allocation2 + $0x610] sm:$0xff]
    %v320 = vld [vmem:[#allocation2 + $0x618] sm:$0xff]
    %v321 = vld [vmem:[#allocation2 + $0x620] sm:$0xff]
    %v322 = vld [vmem:[#allocation2 + $0x628] sm:$0xff]
    %v323 = vld [vmem:[#allocation2 + $0x630] sm:$0xff]
    %v324 = vld [vmem:[#allocation2 + $0x638] sm:$0xff]
    %v325 = vld [vmem:[#allocation2 + $0x640] sm:$0xff]
    %v326 = vld [vmem:[#allocation2 + $0x648] sm:$0xff]
    %v327 = vld [vmem:[#allocation2 + $0x650] sm:$0xff]
    %v328 = vld [vmem:[#allocation2 + $0x658] sm:$0xff]
    %v329 = vld [vmem:[#allocation2 + $0x660] sm:$0xff]
    %v330 = vld [vmem:[#allocation2 + $0x668] sm:$0xff]
    %v331 = vld [vmem:[#allocation2 + $0x670] sm:$0xff]
    %v332 = vld [vmem:[#allocation2 + $0x678] sm:$0xff]
    %v333 = vld [vmem:[#allocation2 + $0x680] sm:$0xff]
    %v334 = vld [vmem:[#allocation2 + $0x688] sm:$0xff]
    %v335 = vld [vmem:[#allocation2 + $0x690] sm:$0xff]
    %v336 = vld [vmem:[#allocation2 + $0x698] sm:$0xff]
    %v337 = vld [vmem:[#allocation2 + $0x6a0] sm:$0xff]
    %v338 = vld [vmem:[#allocation2 + $0x6a8] sm:$0xff]
    %v339 = vld [vmem:[#allocation2 + $0x6b0] sm:$0xff]
    %v340 = vld [vmem:[#allocation2 + $0x6b8] sm:$0xff]
    %v341 = vld [vmem:[#allocation2 + $0x6c0] sm:$0xff]
    %v342 = vld [vmem:[#allocation2 + $0x6c8] sm:$0xff]
    %v343 = vld [vmem:[#allocation2 + $0x6d0] sm:$0xff]
    %v344 = vld [vmem:[#allocation2 + $0x6d8] sm:$0xff]
    %v345 = vld [vmem:[#allocation2 + $0x6e0] sm:$0xff]
    %v346 = vld [vmem:[#allocation2 + $0x6e8] sm:$0xff]
    %v347 = vld [vmem:[#allocation2 + $0x6f0] sm:$0xff]
    %v348 = vld [vmem:[#allocation2 + $0x6f8] sm:$0xff]
    %v349 = vld [vmem:[#allocation2 + $0x700] sm:$0xff]
    %v350 = vld [vmem:[#allocation2 + $0x708] sm:$0xff]
    %v351 = vld [vmem:[#allocation2 + $0x710] sm:$0xff]
    %v352 = vld [vmem:[#allocation2 + $0x718] sm:$0xff]
    %v353 = vld [vmem:[#allocation2 + $0x720] sm:$0xff]
    %v354 = vld [vmem:[#allocation2 + $0x728] sm:$0xff]
    %v355 = vld [vmem:[#allocation2 + $0x730] sm:$0xff]
    %v356 = vld [vmem:[#allocation2 + $0x738] sm:$0xff]
    %v357 = vld [vmem:[#allocation2 + $0x740] sm:$0xff]
    %v358 = vld [vmem:[#allocation2 + $0x748] sm:$0xff]
    %v359 = vld [vmem:[#allocation2 + $0x750] sm:$0xff]
    %v360 = vld [vmem:[#allocation2 + $0x758] sm:$0xff]
    %v361 = vld [vmem:[#allocation2 + $0x760] sm:$0xff]
    %v362 = vld [vmem:[#allocation2 + $0x768] sm:$0xff]
    %v363 = vld [vmem:[#allocation2 + $0x770] sm:$0xff]
    %v364 = vld [vmem:[#allocation2 + $0x778] sm:$0xff]
    %v365 = vld [vmem:[#allocation2 + $0x780] sm:$0xff]
    %v366 = vld [vmem:[#allocation2 + $0x788] sm:$0xff]
    %v367 = vld [vmem:[#allocation2 + $0x790] sm:$0xff]
    %v368 = vld [vmem:[#allocation2 + $0x798] sm:$0xff]
    %v369 = vld [vmem:[#allocation2 + $0x7a0] sm:$0xff]
    %v370 = vld [vmem:[#allocation2 + $0x7a8] sm:$0xff]
    %v371 = vld [vmem:[#allocation2 + $0x7b0] sm:$0xff]
    %v372 = vld [vmem:[#allocation2 + $0x7b8] sm:$0xff]
    %v373 = vld [vmem:[#allocation2 + $0x7c0] sm:$0xff]
    %v374 = vld [vmem:[#allocation2 + $0x7c8] sm:$0xff]
    %v375 = vld [vmem:[#allocation2 + $0x7d0] sm:$0xff]
    %v376 = vld [vmem:[#allocation2 + $0x7d8] sm:$0xff]
    %v377 = vld [vmem:[#allocation2 + $0x7e0] sm:$0xff]
    %v378 = vld [vmem:[#allocation2 + $0x7e8] sm:$0xff]
    %v379 = vld [vmem:[#allocation2 + $0x7f0] sm:$0xff]
    %v380 = vld [vmem:[#allocation2 + $0x7f8] sm:$0xff]
    %v381 = vld [vmem:[#allocation2 + $0x800] sm:$0xff]
    %v382 = vld [vmem:[#allocation2 + $0x808] sm:$0xff]
    %v383 = vld [vmem:[#allocation2 + $0x810] sm:$0xff]
    %v384 = vld [vmem:[#allocation2 + $0x818] sm:$0xff]
    %v385 = vld [vmem:[#allocation2 + $0x820] sm:$0xff]
    %v386 = vld [vmem:[#allocation2 + $0x828] sm:$0xff]
    %v387 = vld [vmem:[#allocation2 + $0x830] sm:$0xff]
    %v388 = vld [vmem:[#allocation2 + $0x838] sm:$0xff]
    %v389 = vld [vmem:[#allocation2 + $0x840] sm:$0xff]
    %v390 = vld [vmem:[#allocation2 + $0x848] sm:$0xff]
    %v391 = vld [vmem:[#allocation2 + $0x850] sm:$0xff]
    %v392 = vld [vmem:[#allocation2 + $0x858] sm:$0xff]
    %v393 = vld [vmem:[#allocation2 + $0x860] sm:$0xff]
    %v394 = vld [vmem:[#allocation2 + $0x868] sm:$0xff]
    %v395 = vld [vmem:[#allocation2 + $0x870] sm:$0xff]
    %v396 = vld [vmem:[#allocation2 + $0x878] sm:$0xff]
    %v397 = vld [vmem:[#allocation2 + $0x880] sm:$0xff]
    %v398 = vld [vmem:[#allocation2 + $0x888] sm:$0xff]
    %v399 = vld [vmem:[#allocation2 + $0x890] sm:$0xff]
    %v400 = vld [vmem:[#allocation2 + $0x898] sm:$0xff]
    %v401 = vld [vmem:[#allocation2 + $0x8a0] sm:$0xff]
    %v402 = vld [vmem:[#allocation2 + $0x8a8] sm:$0xff]
    %v403 = vld [vmem:[#allocation2 + $0x8b0] sm:$0xff]
    %v404 = vld [vmem:[#allocation2 + $0x8b8] sm:$0xff]
    %v405 = vld [vmem:[#allocation2 + $0x8c0] sm:$0xff]
    %v406 = vld [vmem:[#allocation2 + $0x8c8] sm:$0xff]
    %v407 = vld [vmem:[#allocation2 + $0x8d0] sm:$0xff]
    %v408 = vld [vmem:[#allocation2 + $0x8d8] sm:$0xff]
    %v409 = vld [vmem:[#allocation2 + $0x8e0] sm:$0xff]
    %v410 = vld [vmem:[#allocation2 + $0x8e8] sm:$0xff]
    %v411 = vld [vmem:[#allocation2 + $0x8f0] sm:$0xff]
    %v412 = vld [vmem:[#allocation2 + $0x8f8] sm:$0xff]
    %v413 = vld [vmem:[#allocation4] sm:$0x3f]
    %v415 = vlaneseq
    %v416 = vshrl.u32 %v415, 7
    %v417 = vsub.s32 0, %v416
    %v418 = vrot.slane %v413, %v417
    %v419 = vlaneseq
    %v420 = vshrl.u32 %v419, 7
    %v421 = vsub.s32 1, %v420
    %v422 = vrot.slane %v413, %v421
    %v423 = vlaneseq
    %v424 = vshrl.u32 %v423, 7
    %v425 = vsub.s32 2, %v424
    %v426 = vrot.slane %v413, %v425
    %v427 = vlaneseq
    %v428 = vshrl.u32 %v427, 7
    %v429 = vsub.s32 3, %v428
    %v430 = vrot.slane %v413, %v429
    %v431 = vlaneseq
    %v432 = vshrl.u32 %v431, 7
    %v433 = vsub.s32 4, %v432
    %v434 = vrot.slane %v413, %v433
    %v435 = vlaneseq
    %v436 = vshrl.u32 %v435, 7
    %v437 = vsub.s32 5, %v436
    %v438 = vrot.slane %v413, %v437
    %v448 = vunpack.c.l.b16 %v122
    %v449 = vunpack.c.h.b16 %v122
    %v450 = vunpack.c.l.b16 %v123
    %v451 = vunpack.c.h.b16 %v123
    %v452 = vunpack.c.l.b16 %v124
    %v453 = vunpack.c.h.b16 %v124
    %v454 = vpack.c.b16 %v448, %v448
    %v455 = vpack.c.b16 %v449, %v449
    %v456 = vpack.c.b16 %v450, %v450
    %v457 = vpack.c.b16 %v451, %v451
    %v458 = vpack.c.b16 %v452, %v452
    %v459 = vpack.c.b16 %v453, %v453
    %v754 = vunpack.c.l.b16 %v125
    %v755 = vunpack.c.h.b16 %v125
    %v756 = vunpack.c.l.b16 %v126
    %v757 = vunpack.c.h.b16 %v126
    %v758 = vunpack.c.l.b16 %v127
    %v759 = vunpack.c.h.b16 %v127
    %v760 = vunpack.c.l.b16 %v128
    %v761 = vunpack.c.h.b16 %v128
    %v762 = vunpack.c.l.b16 %v129
    %v763 = vunpack.c.h.b16 %v129
    %v764 = vunpack.c.l.b16 %v130
    %v765 = vunpack.c.h.b16 %v130
    %v766 = vunpack.c.l.b16 %v131
    %v767 = vunpack.c.h.b16 %v131
    %v768 = vunpack.c.l.b16 %v132
    %v769 = vunpack.c.h.b16 %v132
    %v770 = vunpack.c.l.b16 %v133
    %v771 = vunpack.c.h.b16 %v133
    %v772 = vunpack.c.l.b16 %v134
    %v773 = vunpack.c.h.b16 %v134
    %v774 = vunpack.c.l.b16 %v135
    %v775 = vunpack.c.h.b16 %v135
    %v776 = vunpack.c.l.b16 %v136
    %v777 = vunpack.c.h.b16 %v136
    %v778 = vunpack.c.l.b16 %v137
    %v779 = vunpack.c.h.b16 %v137
    %v780 = vunpack.c.l.b16 %v138
    %v781 = vunpack.c.h.b16 %v138
    %v782 = vunpack.c.l.b16 %v139
    %v783 = vunpack.c.h.b16 %v139
    %v784 = vunpack.c.l.b16 %v140
    %v785 = vunpack.c.h.b16 %v140
    %v786 = vunpack.c.l.b16 %v141
    %v787 = vunpack.c.h.b16 %v141
    %v788 = vunpack.c.l.b16 %v142
    %v789 = vunpack.c.h.b16 %v142
    %v790 = vunpack.c.l.b16 %v143
    %v791 = vunpack.c.h.b16 %v143
    %v792 = vunpack.c.l.b16 %v144
    %v793 = vunpack.c.h.b16 %v144
    %v794 = vunpack.c.l.b16 %v145
    %v795 = vunpack.c.h.b16 %v145
    %v796 = vunpack.c.l.b16 %v146
    %v797 = vunpack.c.h.b16 %v146
    %v798 = vunpack.c.l.b16 %v147
    %v799 = vunpack.c.h.b16 %v147
    %v800 = vunpack.c.l.b16 %v148
    %v801 = vunpack.c.h.b16 %v148
    %v802 = vunpack.c.l.b16 %v149
    %v803 = vunpack.c.h.b16 %v149
    %v804 = vunpack.c.l.b16 %v150
    %v805 = vunpack.c.h.b16 %v150
    %v806 = vunpack.c.l.b16 %v151
    %v807 = vunpack.c.h.b16 %v151
    %v808 = vunpack.c.l.b16 %v152
    %v809 = vunpack.c.h.b16 %v152
    %v810 = vunpack.c.l.b16 %v153
    %v811 = vunpack.c.h.b16 %v153
    %v812 = vunpack.c.l.b16 %v154
    %v813 = vunpack.c.h.b16 %v154
    %v814 = vunpack.c.l.b16 %v155
    %v815 = vunpack.c.h.b16 %v155
    %v816 = vunpack.c.l.b16 %v156
    %v817 = vunpack.c.h.b16 %v156
    %v818 = vunpack.c.l.b16 %v157
    %v819 = vunpack.c.h.b16 %v157
    %v820 = vunpack.c.l.b16 %v158
    %v821 = vunpack.c.h.b16 %v158
    %v822 = vunpack.c.l.b16 %v159
    %v823 = vunpack.c.h.b16 %v159
    %v824 = vunpack.c.l.b16 %v160
    %v825 = vunpack.c.h.b16 %v160
    %v826 = vunpack.c.l.b16 %v161
    %v827 = vunpack.c.h.b16 %v161
    %v828 = vunpack.c.l.b16 %v162
    %v829 = vunpack.c.h.b16 %v162
    %v830 = vunpack.c.l.b16 %v163
    %v831 = vunpack.c.h.b16 %v163
    %v832 = vunpack.c.l.b16 %v164
    %v833 = vunpack.c.h.b16 %v164
    %v834 = vunpack.c.l.b16 %v165
    %v835 = vunpack.c.h.b16 %v165
    %v836 = vunpack.c.l.b16 %v166
    %v837 = vunpack.c.h.b16 %v166
    %v838 = vunpack.c.l.b16 %v167
    %v839 = vunpack.c.h.b16 %v167
    %v840 = vunpack.c.l.b16 %v168
    %v841 = vunpack.c.h.b16 %v168
    %v842 = vunpack.c.l.b16 %v169
    %v843 = vunpack.c.h.b16 %v169
    %v844 = vunpack.c.l.b16 %v170
    %v845 = vunpack.c.h.b16 %v170
    %v846 = vunpack.c.l.b16 %v171
    %v847 = vunpack.c.h.b16 %v171
    %v848 = vunpack.c.l.b16 %v172
    %v849 = vunpack.c.h.b16 %v172
    %v850 = vunpack.c.l.b16 %v173
    %v851 = vunpack.c.h.b16 %v173
    %v852 = vunpack.c.l.b16 %v174
    %v853 = vunpack.c.h.b16 %v174
    %v854 = vunpack.c.l.b16 %v175
    %v855 = vunpack.c.h.b16 %v175
    %v856 = vunpack.c.l.b16 %v176
    %v857 = vunpack.c.h.b16 %v176
    %v858 = vunpack.c.l.b16 %v177
    %v859 = vunpack.c.h.b16 %v177
    %v860 = vunpack.c.l.b16 %v178
    %v861 = vunpack.c.h.b16 %v178
    %v862 = vunpack.c.l.b16 %v179
    %v863 = vunpack.c.h.b16 %v179
    %v864 = vunpack.c.l.b16 %v180
    %v865 = vunpack.c.h.b16 %v180
    %v866 = vunpack.c.l.b16 %v181
    %v867 = vunpack.c.h.b16 %v181
    %v868 = vunpack.c.l.b16 %v182
    %v869 = vunpack.c.h.b16 %v182
    %v870 = vunpack.c.l.b16 %v183
    %v871 = vunpack.c.h.b16 %v183
    %v872 = vunpack.c.l.b16 %v184
    %v873 = vunpack.c.h.b16 %v184
    %v874 = vunpack.c.l.b16 %v185
    %v875 = vunpack.c.h.b16 %v185
    %v876 = vunpack.c.l.b16 %v186
    %v877 = vunpack.c.h.b16 %v186
    %v878 = vunpack.c.l.b16 %v187
    %v879 = vunpack.c.h.b16 %v187
    %v880 = vunpack.c.l.b16 %v188
    %v881 = vunpack.c.h.b16 %v188
    %v882 = vunpack.c.l.b16 %v189
    %v883 = vunpack.c.h.b16 %v189
    %v884 = vunpack.c.l.b16 %v190
    %v885 = vunpack.c.h.b16 %v190
    %v886 = vunpack.c.l.b16 %v191
    %v887 = vunpack.c.h.b16 %v191
    %v888 = vunpack.c.l.b16 %v192
    %v889 = vunpack.c.h.b16 %v192
    %v890 = vunpack.c.l.b16 %v193
    %v891 = vunpack.c.h.b16 %v193
    %v892 = vunpack.c.l.b16 %v194
    %v893 = vunpack.c.h.b16 %v194
    %v894 = vunpack.c.l.b16 %v195
    %v895 = vunpack.c.h.b16 %v195
    %v896 = vunpack.c.l.b16 %v196
    %v897 = vunpack.c.h.b16 %v196
    %v898 = vunpack.c.l.b16 %v197
    %v899 = vunpack.c.h.b16 %v197
    %v900 = vunpack.c.l.b16 %v198
    %v901 = vunpack.c.h.b16 %v198
    %v902 = vunpack.c.l.b16 %v199
    %v903 = vunpack.c.h.b16 %v199
    %v904 = vunpack.c.l.b16 %v200
    %v905 = vunpack.c.h.b16 %v200
    %v906 = vunpack.c.l.b16 %v201
    %v907 = vunpack.c.h.b16 %v201
    %v908 = vunpack.c.l.b16 %v202
    %v909 = vunpack.c.h.b16 %v202
    %v910 = vunpack.c.l.b16 %v203
    %v911 = vunpack.c.h.b16 %v203
    %v912 = vunpack.c.l.b16 %v204
    %v913 = vunpack.c.h.b16 %v204
    %v914 = vunpack.c.l.b16 %v205
    %v915 = vunpack.c.h.b16 %v205
    %v916 = vunpack.c.l.b16 %v206
    %v917 = vunpack.c.h.b16 %v206
    %v918 = vunpack.c.l.b16 %v207
    %v919 = vunpack.c.h.b16 %v207
    %v920 = vunpack.c.l.b16 %v208
    %v921 = vunpack.c.h.b16 %v208
    %v922 = vunpack.c.l.b16 %v209
    %v923 = vunpack.c.h.b16 %v209
    %v924 = vunpack.c.l.b16 %v210
    %v925 = vunpack.c.h.b16 %v210
    %v926 = vunpack.c.l.b16 %v211
    %v927 = vunpack.c.h.b16 %v211
    %v928 = vunpack.c.l.b16 %v212
    %v929 = vunpack.c.h.b16 %v212
    %v930 = vunpack.c.l.b16 %v213
    %v931 = vunpack.c.h.b16 %v213
    %v932 = vunpack.c.l.b16 %v214
    %v933 = vunpack.c.h.b16 %v214
    %v934 = vunpack.c.l.b16 %v215
    %v935 = vunpack.c.h.b16 %v215
    %v936 = vunpack.c.l.b16 %v216
    %v937 = vunpack.c.h.b16 %v216
    %v938 = vunpack.c.l.b16 %v217
    %v939 = vunpack.c.h.b16 %v217
    %v940 = vunpack.c.l.b16 %v218
    %v941 = vunpack.c.h.b16 %v218
    %v942 = vunpack.c.l.b16 %v219
    %v943 = vunpack.c.h.b16 %v219
    %v944 = vunpack.c.l.b16 %v220
    %v945 = vunpack.c.h.b16 %v220
    %v946 = vunpack.c.l.b16 %v221
    %v947 = vunpack.c.h.b16 %v221
    %v948 = vunpack.c.l.b16 %v222
    %v949 = vunpack.c.h.b16 %v222
    %v950 = vunpack.c.l.b16 %v223
    %v951 = vunpack.c.h.b16 %v223
    %v952 = vunpack.c.l.b16 %v224
    %v953 = vunpack.c.h.b16 %v224
    %v954 = vunpack.c.l.b16 %v225
    %v955 = vunpack.c.h.b16 %v225
    %v956 = vunpack.c.l.b16 %v226
    %v957 = vunpack.c.h.b16 %v226
    %v958 = vunpack.c.l.b16 %v227
    %v959 = vunpack.c.h.b16 %v227
    %v960 = vunpack.c.l.b16 %v228
    %v961 = vunpack.c.h.b16 %v228
    %v962 = vunpack.c.l.b16 %v229
    %v963 = vunpack.c.h.b16 %v229
    %v964 = vunpack.c.l.b16 %v230
    %v965 = vunpack.c.h.b16 %v230
    %v966 = vunpack.c.l.b16 %v231
    %v967 = vunpack.c.h.b16 %v231
    %v968 = vunpack.c.l.b16 %v232
    %v969 = vunpack.c.h.b16 %v232
    %v970 = vunpack.c.l.b16 %v233
    %v971 = vunpack.c.h.b16 %v233
    %v972 = vunpack.c.l.b16 %v234
    %v973 = vunpack.c.h.b16 %v234
    %v974 = vunpack.c.l.b16 %v235
    %v975 = vunpack.c.h.b16 %v235
    %v976 = vunpack.c.l.b16 %v236
    %v977 = vunpack.c.h.b16 %v236
    %v978 = vunpack.c.l.b16 %v237
    %v979 = vunpack.c.h.b16 %v237
    %v980 = vunpack.c.l.b16 %v238
    %v981 = vunpack.c.h.b16 %v238
    %v982 = vunpack.c.l.b16 %v239
    %v983 = vunpack.c.h.b16 %v239
    %v984 = vunpack.c.l.b16 %v240
    %v985 = vunpack.c.h.b16 %v240
    %v986 = vunpack.c.l.b16 %v241
    %v987 = vunpack.c.h.b16 %v241
    %v988 = vunpack.c.l.b16 %v242
    %v989 = vunpack.c.h.b16 %v242
    %v990 = vunpack.c.l.b16 %v243
    %v991 = vunpack.c.h.b16 %v243
    %v992 = vunpack.c.l.b16 %v244
    %v993 = vunpack.c.h.b16 %v244
    %v994 = vunpack.c.l.b16 %v245
    %v995 = vunpack.c.h.b16 %v245
    %v996 = vunpack.c.l.b16 %v246
    %v997 = vunpack.c.h.b16 %v246
    %v998 = vunpack.c.l.b16 %v247
    %v999 = vunpack.c.h.b16 %v247
    %v1000 = vunpack.c.l.b16 %v248
    %v1001 = vunpack.c.h.b16 %v248
    %v1002 = vunpack.c.l.b16 %v249
    %v1003 = vunpack.c.h.b16 %v249
    %v1004 = vunpack.c.l.b16 %v250
    %v1005 = vunpack.c.h.b16 %v250
    %v1006 = vunpack.c.l.b16 %v251
    %v1007 = vunpack.c.h.b16 %v251
    %v1008 = vunpack.c.l.b16 %v252
    %v1009 = vunpack.c.h.b16 %v252
    %v1010 = vunpack.c.l.b16 %v253
    %v1011 = vunpack.c.h.b16 %v253
    %v1012 = vunpack.c.l.b16 %v254
    %v1013 = vunpack.c.h.b16 %v254
    %v1014 = vunpack.c.l.b16 %v255
    %v1015 = vunpack.c.h.b16 %v255
    %v1016 = vunpack.c.l.b16 %v256
    %v1017 = vunpack.c.h.b16 %v256
    %v1018 = vunpack.c.l.b16 %v257
    %v1019 = vunpack.c.h.b16 %v257
    %v1020 = vunpack.c.l.b16 %v258
    %v1021 = vunpack.c.h.b16 %v258
    %v1022 = vunpack.c.l.b16 %v259
    %v1023 = vunpack.c.h.b16 %v259
    %v1024 = vunpack.c.l.b16 %v260
    %v1025 = vunpack.c.h.b16 %v260
    %v1026 = vunpack.c.l.b16 %v261
    %v1027 = vunpack.c.h.b16 %v261
    %v1028 = vunpack.c.l.b16 %v262
    %v1029 = vunpack.c.h.b16 %v262
    %v1030 = vunpack.c.l.b16 %v263
    %v1031 = vunpack.c.h.b16 %v263
    %v1032 = vunpack.c.l.b16 %v264
    %v1033 = vunpack.c.h.b16 %v264
    %v1034 = vunpack.c.l.b16 %v265
    %v1035 = vunpack.c.h.b16 %v265
    %v1036 = vunpack.c.l.b16 %v266
    %v1037 = vunpack.c.h.b16 %v266
    %v1038 = vunpack.c.l.b16 %v267
    %v1039 = vunpack.c.h.b16 %v267
    %v1040 = vunpack.c.l.b16 %v268
    %v1041 = vunpack.c.h.b16 %v268
    %v1042 = vunpack.c.l.b16 %v269
    %v1043 = vunpack.c.h.b16 %v269
    %v1044 = vunpack.c.l.b16 %v270
    %v1045 = vunpack.c.h.b16 %v270
    %v1046 = vunpack.c.l.b16 %v271
    %v1047 = vunpack.c.h.b16 %v271
    %v1048 = vunpack.c.l.b16 %v272
    %v1049 = vunpack.c.h.b16 %v272
    %v1050 = vunpack.c.l.b16 %v273
    %v1051 = vunpack.c.h.b16 %v273
    %v1052 = vunpack.c.l.b16 %v274
    %v1053 = vunpack.c.h.b16 %v274
    %v1054 = vunpack.c.l.b16 %v275
    %v1055 = vunpack.c.h.b16 %v275
    %v1056 = vunpack.c.l.b16 %v276
    %v1057 = vunpack.c.h.b16 %v276
    %v1058 = vunpack.c.l.b16 %v277
    %v1059 = vunpack.c.h.b16 %v277
    %v1060 = vunpack.c.l.b16 %v278
    %v1061 = vunpack.c.h.b16 %v278
    %v1062 = vunpack.c.l.b16 %v279
    %v1063 = vunpack.c.h.b16 %v279
    %v1064 = vunpack.c.l.b16 %v280
    %v1065 = vunpack.c.h.b16 %v280
    %v1066 = vunpack.c.l.b16 %v281
    %v1067 = vunpack.c.h.b16 %v281
    %v1068 = vunpack.c.l.b16 %v282
    %v1069 = vunpack.c.h.b16 %v282
    %v1070 = vunpack.c.l.b16 %v283
    %v1071 = vunpack.c.h.b16 %v283
    %v1072 = vunpack.c.l.b16 %v284
    %v1073 = vunpack.c.h.b16 %v284
    %v1074 = vunpack.c.l.b16 %v285
    %v1075 = vunpack.c.h.b16 %v285
    %v1076 = vunpack.c.l.b16 %v286
    %v1077 = vunpack.c.h.b16 %v286
    %v1078 = vunpack.c.l.b16 %v287
    %v1079 = vunpack.c.h.b16 %v287
    %v1080 = vunpack.c.l.b16 %v288
    %v1081 = vunpack.c.h.b16 %v288
    %v1082 = vunpack.c.l.b16 %v289
    %v1083 = vunpack.c.h.b16 %v289
    %v1084 = vunpack.c.l.b16 %v290
    %v1085 = vunpack.c.h.b16 %v290
    %v1086 = vunpack.c.l.b16 %v291
    %v1087 = vunpack.c.h.b16 %v291
    %v1088 = vunpack.c.l.b16 %v292
    %v1089 = vunpack.c.h.b16 %v292
    %v1090 = vunpack.c.l.b16 %v293
    %v1091 = vunpack.c.h.b16 %v293
    %v1092 = vunpack.c.l.b16 %v294
    %v1093 = vunpack.c.h.b16 %v294
    %v1094 = vunpack.c.l.b16 %v295
    %v1095 = vunpack.c.h.b16 %v295
    %v1096 = vunpack.c.l.b16 %v296
    %v1097 = vunpack.c.h.b16 %v296
    %v1098 = vunpack.c.l.b16 %v297
    %v1099 = vunpack.c.h.b16 %v297
    %v1100 = vunpack.c.l.b16 %v298
    %v1101 = vunpack.c.h.b16 %v298
    %v1102 = vunpack.c.l.b16 %v299
    %v1103 = vunpack.c.h.b16 %v299
    %v1104 = vunpack.c.l.b16 %v300
    %v1105 = vunpack.c.h.b16 %v300
    %v1106 = vunpack.c.l.b16 %v301
    %v1107 = vunpack.c.h.b16 %v301
    %v1108 = vunpack.c.l.b16 %v302
    %v1109 = vunpack.c.h.b16 %v302
    %v1110 = vunpack.c.l.b16 %v303
    %v1111 = vunpack.c.h.b16 %v303
    %v1112 = vunpack.c.l.b16 %v304
    %v1113 = vunpack.c.h.b16 %v304
    %v1114 = vunpack.c.l.b16 %v305
    %v1115 = vunpack.c.h.b16 %v305
    %v1116 = vunpack.c.l.b16 %v306
    %v1117 = vunpack.c.h.b16 %v306
    %v1118 = vunpack.c.l.b16 %v307
    %v1119 = vunpack.c.h.b16 %v307
    %v1120 = vunpack.c.l.b16 %v308
    %v1121 = vunpack.c.h.b16 %v308
    %v1122 = vunpack.c.l.b16 %v309
    %v1123 = vunpack.c.h.b16 %v309
    %v1124 = vunpack.c.l.b16 %v310
    %v1125 = vunpack.c.h.b16 %v310
    %v1126 = vunpack.c.l.b16 %v311
    %v1127 = vunpack.c.h.b16 %v311
    %v1128 = vunpack.c.l.b16 %v312
    %v1129 = vunpack.c.h.b16 %v312
    %v1130 = vunpack.c.l.b16 %v313
    %v1131 = vunpack.c.h.b16 %v313
    %v1132 = vunpack.c.l.b16 %v314
    %v1133 = vunpack.c.h.b16 %v314
    %v1134 = vunpack.c.l.b16 %v315
    %v1135 = vunpack.c.h.b16 %v315
    %v1136 = vunpack.c.l.b16 %v316
    %v1137 = vunpack.c.h.b16 %v316
    %v1138 = vunpack.c.l.b16 %v317
    %v1139 = vunpack.c.h.b16 %v317
    %v1140 = vunpack.c.l.b16 %v318
    %v1141 = vunpack.c.h.b16 %v318
    %v1142 = vunpack.c.l.b16 %v319
    %v1143 = vunpack.c.h.b16 %v319
    %v1144 = vunpack.c.l.b16 %v320
    %v1145 = vunpack.c.h.b16 %v320
    %v1146 = vunpack.c.l.b16 %v321
    %v1147 = vunpack.c.h.b16 %v321
    %v1148 = vunpack.c.l.b16 %v322
    %v1149 = vunpack.c.h.b16 %v322
    %v1150 = vunpack.c.l.b16 %v323
    %v1151 = vunpack.c.h.b16 %v323
    %v1152 = vunpack.c.l.b16 %v324
    %v1153 = vunpack.c.h.b16 %v324
    %v1154 = vunpack.c.l.b16 %v325
    %v1155 = vunpack.c.h.b16 %v325
    %v1156 = vunpack.c.l.b16 %v326
    %v1157 = vunpack.c.h.b16 %v326
    %v1158 = vunpack.c.l.b16 %v327
    %v1159 = vunpack.c.h.b16 %v327
    %v1160 = vunpack.c.l.b16 %v328
    %v1161 = vunpack.c.h.b16 %v328
    %v1162 = vunpack.c.l.b16 %v329
    %v1163 = vunpack.c.h.b16 %v329
    %v1164 = vunpack.c.l.b16 %v330
    %v1165 = vunpack.c.h.b16 %v330
    %v1166 = vunpack.c.l.b16 %v331
    %v1167 = vunpack.c.h.b16 %v331
    %v1168 = vunpack.c.l.b16 %v332
    %v1169 = vunpack.c.h.b16 %v332
    %v1170 = vunpack.c.l.b16 %v333
    %v1171 = vunpack.c.h.b16 %v333
    %v1172 = vunpack.c.l.b16 %v334
    %v1173 = vunpack.c.h.b16 %v334
    %v1174 = vunpack.c.l.b16 %v335
    %v1175 = vunpack.c.h.b16 %v335
    %v1176 = vunpack.c.l.b16 %v336
    %v1177 = vunpack.c.h.b16 %v336
    %v1178 = vunpack.c.l.b16 %v337
    %v1179 = vunpack.c.h.b16 %v337
    %v1180 = vunpack.c.l.b16 %v338
    %v1181 = vunpack.c.h.b16 %v338
    %v1182 = vunpack.c.l.b16 %v339
    %v1183 = vunpack.c.h.b16 %v339
    %v1184 = vunpack.c.l.b16 %v340
    %v1185 = vunpack.c.h.b16 %v340
    %v1186 = vunpack.c.l.b16 %v341
    %v1187 = vunpack.c.h.b16 %v341
    %v1188 = vunpack.c.l.b16 %v342
    %v1189 = vunpack.c.h.b16 %v342
    %v1190 = vunpack.c.l.b16 %v343
    %v1191 = vunpack.c.h.b16 %v343
    %v1192 = vunpack.c.l.b16 %v344
    %v1193 = vunpack.c.h.b16 %v344
    %v1194 = vunpack.c.l.b16 %v345
    %v1195 = vunpack.c.h.b16 %v345
    %v1196 = vunpack.c.l.b16 %v346
    %v1197 = vunpack.c.h.b16 %v346
    %v1198 = vunpack.c.l.b16 %v347
    %v1199 = vunpack.c.h.b16 %v347
    %v1200 = vunpack.c.l.b16 %v348
    %v1201 = vunpack.c.h.b16 %v348
    %v1202 = vunpack.c.l.b16 %v349
    %v1203 = vunpack.c.h.b16 %v349
    %v1204 = vunpack.c.l.b16 %v350
    %v1205 = vunpack.c.h.b16 %v350
    %v1206 = vunpack.c.l.b16 %v351
    %v1207 = vunpack.c.h.b16 %v351
    %v1208 = vunpack.c.l.b16 %v352
    %v1209 = vunpack.c.h.b16 %v352
    %v1210 = vunpack.c.l.b16 %v353
    %v1211 = vunpack.c.h.b16 %v353
    %v1212 = vunpack.c.l.b16 %v354
    %v1213 = vunpack.c.h.b16 %v354
    %v1214 = vunpack.c.l.b16 %v355
    %v1215 = vunpack.c.h.b16 %v355
    %v1216 = vunpack.c.l.b16 %v356
    %v1217 = vunpack.c.h.b16 %v356
    %v1218 = vunpack.c.l.b16 %v357
    %v1219 = vunpack.c.h.b16 %v357
    %v1220 = vunpack.c.l.b16 %v358
    %v1221 = vunpack.c.h.b16 %v358
    %v1222 = vunpack.c.l.b16 %v359
    %v1223 = vunpack.c.h.b16 %v359
    %v1224 = vunpack.c.l.b16 %v360
    %v1225 = vunpack.c.h.b16 %v360
    %v1226 = vunpack.c.l.b16 %v361
    %v1227 = vunpack.c.h.b16 %v361
    %v1228 = vunpack.c.l.b16 %v362
    %v1229 = vunpack.c.h.b16 %v362
    %v1230 = vunpack.c.l.b16 %v363
    %v1231 = vunpack.c.h.b16 %v363
    %v1232 = vunpack.c.l.b16 %v364
    %v1233 = vunpack.c.h.b16 %v364
    %v1234 = vunpack.c.l.b16 %v365
    %v1235 = vunpack.c.h.b16 %v365
    %v1236 = vunpack.c.l.b16 %v366
    %v1237 = vunpack.c.h.b16 %v366
    %v1238 = vunpack.c.l.b16 %v367
    %v1239 = vunpack.c.h.b16 %v367
    %v1240 = vunpack.c.l.b16 %v368
    %v1241 = vunpack.c.h.b16 %v368
    %v1242 = vunpack.c.l.b16 %v369
    %v1243 = vunpack.c.h.b16 %v369
    %v1244 = vunpack.c.l.b16 %v370
    %v1245 = vunpack.c.h.b16 %v370
    %v1246 = vunpack.c.l.b16 %v371
    %v1247 = vunpack.c.h.b16 %v371
    %v1248 = vunpack.c.l.b16 %v372
    %v1249 = vunpack.c.h.b16 %v372
    %v1250 = vunpack.c.l.b16 %v373
    %v1251 = vunpack.c.h.b16 %v373
    %v1252 = vunpack.c.l.b16 %v374
    %v1253 = vunpack.c.h.b16 %v374
    %v1254 = vunpack.c.l.b16 %v375
    %v1255 = vunpack.c.h.b16 %v375
    %v1256 = vunpack.c.l.b16 %v376
    %v1257 = vunpack.c.h.b16 %v376
    %v1258 = vunpack.c.l.b16 %v377
    %v1259 = vunpack.c.h.b16 %v377
    %v1260 = vunpack.c.l.b16 %v378
    %v1261 = vunpack.c.h.b16 %v378
    %v1262 = vunpack.c.l.b16 %v379
    %v1263 = vunpack.c.h.b16 %v379
    %v1264 = vunpack.c.l.b16 %v380
    %v1265 = vunpack.c.h.b16 %v380
    %v1266 = vunpack.c.l.b16 %v381
    %v1267 = vunpack.c.h.b16 %v381
    %v1268 = vunpack.c.l.b16 %v382
    %v1269 = vunpack.c.h.b16 %v382
    %v1270 = vunpack.c.l.b16 %v383
    %v1271 = vunpack.c.h.b16 %v383
    %v1272 = vunpack.c.l.b16 %v384
    %v1273 = vunpack.c.h.b16 %v384
    %v1274 = vunpack.c.l.b16 %v385
    %v1275 = vunpack.c.h.b16 %v385
    %v1276 = vunpack.c.l.b16 %v386
    %v1277 = vunpack.c.h.b16 %v386
    %v1278 = vunpack.c.l.b16 %v387
    %v1279 = vunpack.c.h.b16 %v387
    %v1280 = vunpack.c.l.b16 %v388
    %v1281 = vunpack.c.h.b16 %v388
    %v1282 = vunpack.c.l.b16 %v389
    %v1283 = vunpack.c.h.b16 %v389
    %v1284 = vunpack.c.l.b16 %v390
    %v1285 = vunpack.c.h.b16 %v390
    %v1286 = vunpack.c.l.b16 %v391
    %v1287 = vunpack.c.h.b16 %v391
    %v1288 = vunpack.c.l.b16 %v392
    %v1289 = vunpack.c.h.b16 %v392
    %v1290 = vunpack.c.l.b16 %v393
    %v1291 = vunpack.c.h.b16 %v393
    %v1292 = vunpack.c.l.b16 %v394
    %v1293 = vunpack.c.h.b16 %v394
    %v1294 = vunpack.c.l.b16 %v395
    %v1295 = vunpack.c.h.b16 %v395
    %v1296 = vunpack.c.l.b16 %v396
    %v1297 = vunpack.c.h.b16 %v396
    %v1298 = vunpack.c.l.b16 %v397
    %v1299 = vunpack.c.h.b16 %v397
    %v1300 = vunpack.c.l.b16 %v398
    %v1301 = vunpack.c.h.b16 %v398
    %v1302 = vunpack.c.l.b16 %v399
    %v1303 = vunpack.c.h.b16 %v399
    %v1304 = vunpack.c.l.b16 %v400
    %v1305 = vunpack.c.h.b16 %v400
    %v1306 = vunpack.c.l.b16 %v401
    %v1307 = vunpack.c.h.b16 %v401
    %v1308 = vunpack.c.l.b16 %v402
    %v1309 = vunpack.c.h.b16 %v402
    %v1310 = vunpack.c.l.b16 %v403
    %v1311 = vunpack.c.h.b16 %v403
    %v1312 = vunpack.c.l.b16 %v404
    %v1313 = vunpack.c.h.b16 %v404
    %v1314 = vunpack.c.l.b16 %v405
    %v1315 = vunpack.c.h.b16 %v405
    %v1316 = vunpack.c.l.b16 %v406
    %v1317 = vunpack.c.h.b16 %v406
    %v1318 = vunpack.c.l.b16 %v407
    %v1319 = vunpack.c.h.b16 %v407
    %v1320 = vunpack.c.l.b16 %v408
    %v1321 = vunpack.c.h.b16 %v408
    %v1322 = vunpack.c.l.b16 %v409
    %v1323 = vunpack.c.h.b16 %v409
    %v1324 = vunpack.c.l.b16 %v410
    %v1325 = vunpack.c.h.b16 %v410
    %v1326 = vunpack.c.l.b16 %v411
    %v1327 = vunpack.c.h.b16 %v411
    %v1328 = vunpack.c.l.b16 %v412
    %v1329 = vunpack.c.h.b16 %v412
    %v1330 = vpack.c.b16 %v760, %v754
    %v1331 = vpack.c.b16 %v761, %v755
    %v1332 = vpack.c.b16 %v762, %v756
    %v1333 = vpack.c.b16 %v763, %v757
    %v1334 = vpack.c.b16 %v764, %v758
    %v1335 = vpack.c.b16 %v765, %v759
    %v1336 = vpack.c.b16 %v772, %v766
    %v1337 = vpack.c.b16 %v773, %v767
    %v1338 = vpack.c.b16 %v774, %v768
    %v1339 = vpack.c.b16 %v775, %v769
    %v1340 = vpack.c.b16 %v776, %v770
    %v1341 = vpack.c.b16 %v777, %v771
    %v1342 = vpack.c.b16 %v784, %v778
    %v1343 = vpack.c.b16 %v785, %v779
    %v1344 = vpack.c.b16 %v786, %v780
    %v1345 = vpack.c.b16 %v787, %v781
    %v1346 = vpack.c.b16 %v788, %v782
    %v1347 = vpack.c.b16 %v789, %v783
    %v1348 = vpack.c.b16 %v796, %v790
    %v1349 = vpack.c.b16 %v797, %v791
    %v1350 = vpack.c.b16 %v798, %v792
    %v1351 = vpack.c.b16 %v799, %v793
    %v1352 = vpack.c.b16 %v800, %v794
    %v1353 = vpack.c.b16 %v801, %v795
    %v1354 = vpack.c.b16 %v808, %v802
    %v1355 = vpack.c.b16 %v809, %v803
    %v1356 = vpack.c.b16 %v810, %v804
    %v1357 = vpack.c.b16 %v811, %v805
    %v1358 = vpack.c.b16 %v812, %v806
    %v1359 = vpack.c.b16 %v813, %v807
    %v1360 = vpack.c.b16 %v820, %v814
    %v1361 = vpack.c.b16 %v821, %v815
    %v1362 = vpack.c.b16 %v822, %v816
    %v1363 = vpack.c.b16 %v823, %v817
    %v1364 = vpack.c.b16 %v824, %v818
    %v1365 = vpack.c.b16 %v825, %v819
    %v1366 = vpack.c.b16 %v832, %v826
    %v1367 = vpack.c.b16 %v833, %v827
    %v1368 = vpack.c.b16 %v834, %v828
    %v1369 = vpack.c.b16 %v835, %v829
    %v1370 = vpack.c.b16 %v836, %v830
    %v1371 = vpack.c.b16 %v837, %v831
    %v1372 = vpack.c.b16 %v844, %v838
    %v1373 = vpack.c.b16 %v845, %v839
    %v1374 = vpack.c.b16 %v846, %v840
    %v1375 = vpack.c.b16 %v847, %v841
    %v1376 = vpack.c.b16 %v848, %v842
    %v1377 = vpack.c.b16 %v849, %v843
    %v1378 = vpack.c.b16 %v856, %v850
    %v1379 = vpack.c.b16 %v857, %v851
    %v1380 = vpack.c.b16 %v858, %v852
    %v1381 = vpack.c.b16 %v859, %v853
    %v1382 = vpack.c.b16 %v860, %v854
    %v1383 = vpack.c.b16 %v861, %v855
    %v1384 = vpack.c.b16 %v868, %v862
    %v1385 = vpack.c.b16 %v869, %v863
    %v1386 = vpack.c.b16 %v870, %v864
    %v1387 = vpack.c.b16 %v871, %v865
    %v1388 = vpack.c.b16 %v872, %v866
    %v1389 = vpack.c.b16 %v873, %v867
    %v1390 = vpack.c.b16 %v880, %v874
    %v1391 = vpack.c.b16 %v881, %v875
    %v1392 = vpack.c.b16 %v882, %v876
    %v1393 = vpack.c.b16 %v883, %v877
    %v1394 = vpack.c.b16 %v884, %v878
    %v1395 = vpack.c.b16 %v885, %v879
    %v1396 = vpack.c.b16 %v892, %v886
    %v1397 = vpack.c.b16 %v893, %v887
    %v1398 = vpack.c.b16 %v894, %v888
    %v1399 = vpack.c.b16 %v895, %v889
    %v1400 = vpack.c.b16 %v896, %v890
    %v1401 = vpack.c.b16 %v897, %v891
    %v1402 = vpack.c.b16 %v904, %v898
    %v1403 = vpack.c.b16 %v905, %v899
    %v1404 = vpack.c.b16 %v906, %v900
    %v1405 = vpack.c.b16 %v907, %v901
    %v1406 = vpack.c.b16 %v908, %v902
    %v1407 = vpack.c.b16 %v909, %v903
    %v1408 = vpack.c.b16 %v916, %v910
    %v1409 = vpack.c.b16 %v917, %v911
    %v1410 = vpack.c.b16 %v918, %v912
    %v1411 = vpack.c.b16 %v919, %v913
    %v1412 = vpack.c.b16 %v920, %v914
    %v1413 = vpack.c.b16 %v921, %v915
    %v1414 = vpack.c.b16 %v928, %v922
    %v1415 = vpack.c.b16 %v929, %v923
    %v1416 = vpack.c.b16 %v930, %v924
    %v1417 = vpack.c.b16 %v931, %v925
    %v1418 = vpack.c.b16 %v932, %v926
    %v1419 = vpack.c.b16 %v933, %v927
    %v1420 = vpack.c.b16 %v940, %v934
    %v1421 = vpack.c.b16 %v941, %v935
    %v1422 = vpack.c.b16 %v942, %v936
    %v1423 = vpack.c.b16 %v943, %v937
    %v1424 = vpack.c.b16 %v944, %v938
    %v1425 = vpack.c.b16 %v945, %v939
    %v1426 = vpack.c.b16 %v952, %v946
    %v1427 = vpack.c.b16 %v953, %v947
    %v1428 = vpack.c.b16 %v954, %v948
    %v1429 = vpack.c.b16 %v955, %v949
    %v1430 = vpack.c.b16 %v956, %v950
    %v1431 = vpack.c.b16 %v957, %v951
    %v1432 = vpack.c.b16 %v964, %v958
    %v1433 = vpack.c.b16 %v965, %v959
    %v1434 = vpack.c.b16 %v966, %v960
    %v1435 = vpack.c.b16 %v967, %v961
    %v1436 = vpack.c.b16 %v968, %v962
    %v1437 = vpack.c.b16 %v969, %v963
    %v1438 = vpack.c.b16 %v976, %v970
    %v1439 = vpack.c.b16 %v977, %v971
    %v1440 = vpack.c.b16 %v978, %v972
    %v1441 = vpack.c.b16 %v979, %v973
    %v1442 = vpack.c.b16 %v980, %v974
    %v1443 = vpack.c.b16 %v981, %v975
    %v1444 = vpack.c.b16 %v988, %v982
    %v1445 = vpack.c.b16 %v989, %v983
    %v1446 = vpack.c.b16 %v990, %v984
    %v1447 = vpack.c.b16 %v991, %v985
    %v1448 = vpack.c.b16 %v992, %v986
    %v1449 = vpack.c.b16 %v993, %v987
    %v1450 = vpack.c.b16 %v1000, %v994
    %v1451 = vpack.c.b16 %v1001, %v995
    %v1452 = vpack.c.b16 %v1002, %v996
    %v1453 = vpack.c.b16 %v1003, %v997
    %v1454 = vpack.c.b16 %v1004, %v998
    %v1455 = vpack.c.b16 %v1005, %v999
    %v1456 = vpack.c.b16 %v1012, %v1006
    %v1457 = vpack.c.b16 %v1013, %v1007
    %v1458 = vpack.c.b16 %v1014, %v1008
    %v1459 = vpack.c.b16 %v1015, %v1009
    %v1460 = vpack.c.b16 %v1016, %v1010
    %v1461 = vpack.c.b16 %v1017, %v1011
    %v1462 = vpack.c.b16 %v1024, %v1018
    %v1463 = vpack.c.b16 %v1025, %v1019
    %v1464 = vpack.c.b16 %v1026, %v1020
    %v1465 = vpack.c.b16 %v1027, %v1021
    %v1466 = vpack.c.b16 %v1028, %v1022
    %v1467 = vpack.c.b16 %v1029, %v1023
    %v1468 = vpack.c.b16 %v1036, %v1030
    %v1469 = vpack.c.b16 %v1037, %v1031
    %v1470 = vpack.c.b16 %v1038, %v1032
    %v1471 = vpack.c.b16 %v1039, %v1033
    %v1472 = vpack.c.b16 %v1040, %v1034
    %v1473 = vpack.c.b16 %v1041, %v1035
    %v1474 = vpack.c.b16 %v1048, %v1042
    %v1475 = vpack.c.b16 %v1049, %v1043
    %v1476 = vpack.c.b16 %v1050, %v1044
    %v1477 = vpack.c.b16 %v1051, %v1045
    %v1478 = vpack.c.b16 %v1052, %v1046
    %v1479 = vpack.c.b16 %v1053, %v1047
    %v1480 = vpack.c.b16 %v1060, %v1054
    %v1481 = vpack.c.b16 %v1061, %v1055
    %v1482 = vpack.c.b16 %v1062, %v1056
    %v1483 = vpack.c.b16 %v1063, %v1057
    %v1484 = vpack.c.b16 %v1064, %v1058
    %v1485 = vpack.c.b16 %v1065, %v1059
    %v1486 = vpack.c.b16 %v1072, %v1066
    %v1487 = vpack.c.b16 %v1073, %v1067
    %v1488 = vpack.c.b16 %v1074, %v1068
    %v1489 = vpack.c.b16 %v1075, %v1069
    %v1490 = vpack.c.b16 %v1076, %v1070
    %v1491 = vpack.c.b16 %v1077, %v1071
    %v1492 = vpack.c.b16 %v1084, %v1078
    %v1493 = vpack.c.b16 %v1085, %v1079
    %v1494 = vpack.c.b16 %v1086, %v1080
    %v1495 = vpack.c.b16 %v1087, %v1081
    %v1496 = vpack.c.b16 %v1088, %v1082
    %v1497 = vpack.c.b16 %v1089, %v1083
    %v1498 = vpack.c.b16 %v1096, %v1090
    %v1499 = vpack.c.b16 %v1097, %v1091
    %v1500 = vpack.c.b16 %v1098, %v1092
    %v1501 = vpack.c.b16 %v1099, %v1093
    %v1502 = vpack.c.b16 %v1100, %v1094
    %v1503 = vpack.c.b16 %v1101, %v1095
    %v1504 = vpack.c.b16 %v1108, %v1102
    %v1505 = vpack.c.b16 %v1109, %v1103
    %v1506 = vpack.c.b16 %v1110, %v1104
    %v1507 = vpack.c.b16 %v1111, %v1105
    %v1508 = vpack.c.b16 %v1112, %v1106
    %v1509 = vpack.c.b16 %v1113, %v1107
    %v1510 = vpack.c.b16 %v1120, %v1114
    %v1511 = vpack.c.b16 %v1121, %v1115
    %v1512 = vpack.c.b16 %v1122, %v1116
    %v1513 = vpack.c.b16 %v1123, %v1117
    %v1514 = vpack.c.b16 %v1124, %v1118
    %v1515 = vpack.c.b16 %v1125, %v1119
    %v1516 = vpack.c.b16 %v1132, %v1126
    %v1517 = vpack.c.b16 %v1133, %v1127
    %v1518 = vpack.c.b16 %v1134, %v1128
    %v1519 = vpack.c.b16 %v1135, %v1129
    %v1520 = vpack.c.b16 %v1136, %v1130
    %v1521 = vpack.c.b16 %v1137, %v1131
    %v1522 = vpack.c.b16 %v1144, %v1138
    %v1523 = vpack.c.b16 %v1145, %v1139
    %v1524 = vpack.c.b16 %v1146, %v1140
    %v1525 = vpack.c.b16 %v1147, %v1141
    %v1526 = vpack.c.b16 %v1148, %v1142
    %v1527 = vpack.c.b16 %v1149, %v1143
    %v1528 = vpack.c.b16 %v1156, %v1150
    %v1529 = vpack.c.b16 %v1157, %v1151
    %v1530 = vpack.c.b16 %v1158, %v1152
    %v1531 = vpack.c.b16 %v1159, %v1153
    %v1532 = vpack.c.b16 %v1160, %v1154
    %v1533 = vpack.c.b16 %v1161, %v1155
    %v1534 = vpack.c.b16 %v1168, %v1162
    %v1535 = vpack.c.b16 %v1169, %v1163
    %v1536 = vpack.c.b16 %v1170, %v1164
    %v1537 = vpack.c.b16 %v1171, %v1165
    %v1538 = vpack.c.b16 %v1172, %v1166
    %v1539 = vpack.c.b16 %v1173, %v1167
    %v1540 = vpack.c.b16 %v1180, %v1174
    %v1541 = vpack.c.b16 %v1181, %v1175
    %v1542 = vpack.c.b16 %v1182, %v1176
    %v1543 = vpack.c.b16 %v1183, %v1177
    %v1544 = vpack.c.b16 %v1184, %v1178
    %v1545 = vpack.c.b16 %v1185, %v1179
    %v1546 = vpack.c.b16 %v1192, %v1186
    %v1547 = vpack.c.b16 %v1193, %v1187
    %v1548 = vpack.c.b16 %v1194, %v1188
    %v1549 = vpack.c.b16 %v1195, %v1189
    %v1550 = vpack.c.b16 %v1196, %v1190
    %v1551 = vpack.c.b16 %v1197, %v1191
    %v1552 = vpack.c.b16 %v1204, %v1198
    %v1553 = vpack.c.b16 %v1205, %v1199
    %v1554 = vpack.c.b16 %v1206, %v1200
    %v1555 = vpack.c.b16 %v1207, %v1201
    %v1556 = vpack.c.b16 %v1208, %v1202
    %v1557 = vpack.c.b16 %v1209, %v1203
    %v1558 = vpack.c.b16 %v1216, %v1210
    %v1559 = vpack.c.b16 %v1217, %v1211
    %v1560 = vpack.c.b16 %v1218, %v1212
    %v1561 = vpack.c.b16 %v1219, %v1213
    %v1562 = vpack.c.b16 %v1220, %v1214
    %v1563 = vpack.c.b16 %v1221, %v1215
    %v1564 = vpack.c.b16 %v1228, %v1222
    %v1565 = vpack.c.b16 %v1229, %v1223
    %v1566 = vpack.c.b16 %v1230, %v1224
    %v1567 = vpack.c.b16 %v1231, %v1225
    %v1568 = vpack.c.b16 %v1232, %v1226
    %v1569 = vpack.c.b16 %v1233, %v1227
    %v1570 = vpack.c.b16 %v1240, %v1234
    %v1571 = vpack.c.b16 %v1241, %v1235
    %v1572 = vpack.c.b16 %v1242, %v1236
    %v1573 = vpack.c.b16 %v1243, %v1237
    %v1574 = vpack.c.b16 %v1244, %v1238
    %v1575 = vpack.c.b16 %v1245, %v1239
    %v1576 = vpack.c.b16 %v1252, %v1246
    %v1577 = vpack.c.b16 %v1253, %v1247
    %v1578 = vpack.c.b16 %v1254, %v1248
    %v1579 = vpack.c.b16 %v1255, %v1249
    %v1580 = vpack.c.b16 %v1256, %v1250
    %v1581 = vpack.c.b16 %v1257, %v1251
    %v1582 = vpack.c.b16 %v1264, %v1258
    %v1583 = vpack.c.b16 %v1265, %v1259
    %v1584 = vpack.c.b16 %v1266, %v1260
    %v1585 = vpack.c.b16 %v1267, %v1261
    %v1586 = vpack.c.b16 %v1268, %v1262
    %v1587 = vpack.c.b16 %v1269, %v1263
    %v1588 = vpack.c.b16 %v1276, %v1270
    %v1589 = vpack.c.b16 %v1277, %v1271
    %v1590 = vpack.c.b16 %v1278, %v1272
    %v1591 = vpack.c.b16 %v1279, %v1273
    %v1592 = vpack.c.b16 %v1280, %v1274
    %v1593 = vpack.c.b16 %v1281, %v1275
    %v1594 = vpack.c.b16 %v1288, %v1282
    %v1595 = vpack.c.b16 %v1289, %v1283
    %v1596 = vpack.c.b16 %v1290, %v1284
    %v1597 = vpack.c.b16 %v1291, %v1285
    %v1598 = vpack.c.b16 %v1292, %v1286
    %v1599 = vpack.c.b16 %v1293, %v1287
    %v1600 = vpack.c.b16 %v1300, %v1294
    %v1601 = vpack.c.b16 %v1301, %v1295
    %v1602 = vpack.c.b16 %v1302, %v1296
    %v1603 = vpack.c.b16 %v1303, %v1297
    %v1604 = vpack.c.b16 %v1304, %v1298
    %v1605 = vpack.c.b16 %v1305, %v1299
    %v1606 = vpack.c.b16 %v1312, %v1306
    %v1607 = vpack.c.b16 %v1313, %v1307
    %v1608 = vpack.c.b16 %v1314, %v1308
    %v1609 = vpack.c.b16 %v1315, %v1309
    %v1610 = vpack.c.b16 %v1316, %v1310
    %v1611 = vpack.c.b16 %v1317, %v1311
    %v1612 = vpack.c.b16 %v1324, %v1318
    %v1613 = vpack.c.b16 %v1325, %v1319
    %v1614 = vpack.c.b16 %v1326, %v1320
    %v1615 = vpack.c.b16 %v1327, %v1321
    %v1616 = vpack.c.b16 %v1328, %v1322
    %v1617 = vpack.c.b16 %v1329, %v1323
    %1906 = vmatprep.subr.bf16.mxu0 %v1331
    %1907 = vmatpush1.bf16.msra.mxu0 %v1330
    %1908 = vmatprep.subr.bf16.mxu0 %v1337
    %1909 = vmatpush1.bf16.msra.mxu0 %v1336
    %1910 = vmatprep.subr.bf16.mxu0 %v1343
    %1911 = vmatpush1.bf16.msra.mxu0 %v1342
    %1912 = vmatprep.subr.bf16.mxu0 %v1349
    %1913 = vmatpush1.bf16.msra.mxu0 %v1348
    %1914 = vmatprep.subr.bf16.mxu0 %v1355
    %1915 = vmatpush1.bf16.msra.mxu0 %v1354
    %1916 = vmatprep.subr.bf16.mxu0 %v1361
    %1917 = vmatpush1.bf16.msra.mxu0 %v1360
    %1918 = vmatprep.subr.bf16.mxu0 %v1367
    %1919 = vmatpush1.bf16.msra.mxu0 %v1366
    %1920 = vmatprep.subr.bf16.mxu0 %v1373
    %1921 = vmatpush1.bf16.msra.mxu0 %v1372
    %1922 = vmatprep.subr.bf16.mxu0 %v1379
    %1923 = vmatpush1.bf16.msra.mxu0 %v1378
    %1924 = vmatprep.subr.bf16.mxu0 %v1385
    %1925 = vmatpush1.bf16.msra.mxu0 %v1384
    %1926 = vmatprep.subr.bf16.mxu0 %v1391
    %1927 = vmatpush1.bf16.msra.mxu0 %v1390
    %1928 = vmatprep.subr.bf16.mxu0 %v1397
    %1929 = vmatpush1.bf16.msra.mxu0 %v1396
    %1930 = vmatprep.subr.bf16.mxu0 %v1403
    %1931 = vmatpush1.bf16.msra.mxu0 %v1402
    %1932 = vmatprep.subr.bf16.mxu0 %v1409
    %1933 = vmatpush1.bf16.msra.mxu0 %v1408
    %1934 = vmatprep.subr.bf16.mxu0 %v1415
    %1935 = vmatpush1.bf16.msra.mxu0 %v1414
    %1936 = vmatprep.subr.bf16.mxu0 %v1421
    %1937 = vmatpush1.bf16.msra.mxu0 %v1420
    %1938 = vmatprep.mubr.bf16.mxu0 %v455
    %1939 = vmatmul.mubr.bf16.gmra.mrb[0].mxu0 %v454
    %v1940 = vpop.f32.mrb[0].mxu0
    %v1941 = vadd.f32 %v418, %v1940
    %v1942 = vpop.f32.mrb[0].mxu0
    %v1943 = vadd.f32 %v422, %v1942
    %v1944 = vpop.f32.mrb[0].mxu0
    %v1945 = vpop.f32.mrb[0].mxu0
    %1946 = vdwg.mxu0
    %1947 = vmatprep.subr.bf16.mxu0 %v1427
    %1948 = vmatpush1.bf16.msra.mxu0 %v1426
    %1949 = vmatprep.subr.bf16.mxu0 %v1433
    %1950 = vmatpush1.bf16.msra.mxu0 %v1432
    %1951 = vmatprep.subr.bf16.mxu0 %v1439
    %1952 = vmatpush1.bf16.msra.mxu0 %v1438
    %1953 = vmatprep.subr.bf16.mxu0 %v1445
    %1954 = vmatpush1.bf16.msra.mxu0 %v1444
    %1955 = vmatprep.subr.bf16.mxu0 %v1451
    %1956 = vmatpush1.bf16.msra.mxu0 %v1450
    %1957 = vmatprep.subr.bf16.mxu0 %v1457
    %1958 = vmatpush1.bf16.msra.mxu0 %v1456
    %1959 = vmatprep.subr.bf16.mxu0 %v1463
    %1960 = vmatpush1.bf16.msra.mxu0 %v1462
    %1961 = vmatprep.subr.bf16.mxu0 %v1469
    %1962 = vmatpush1.bf16.msra.mxu0 %v1468
    %1963 = vmatprep.subr.bf16.mxu0 %v1475
    %1964 = vmatpush1.bf16.msra.mxu0 %v1474
    %1965 = vmatprep.subr.bf16.mxu0 %v1481
    %1966 = vmatpush1.bf16.msra.mxu0 %v1480
    %1967 = vmatprep.subr.bf16.mxu0 %v1487
    %1968 = vmatpush1.bf16.msra.mxu0 %v1486
    %1969 = vmatprep.subr.bf16.mxu0 %v1493
    %1970 = vmatpush1.bf16.msra.mxu0 %v1492
    %1971 = vmatprep.subr.bf16.mxu0 %v1499
    %1972 = vmatpush1.bf16.msra.mxu0 %v1498
    %1973 = vmatprep.subr.bf16.mxu0 %v1505
    %1974 = vmatpush1.bf16.msra.mxu0 %v1504
    %1975 = vmatprep.subr.bf16.mxu0 %v1511
    %1976 = vmatpush1.bf16.msra.mxu0 %v1510
    %1977 = vmatprep.subr.bf16.mxu0 %v1517
    %1978 = vmatpush1.bf16.msra.mxu0 %v1516
    %1979 = vmatprep.mubr.bf16.mxu0 %v457
    %1980 = vmatmul.mubr.bf16.gmra.mrb[0].mxu0 %v456
    %v1981 = vpop.f32.mrb[0].mxu0
    %v1982 = vadd.f32 %v1941, %v1981
    %v1983 = vpop.f32.mrb[0].mxu0
    %v1984 = vadd.f32 %v1943, %v1983
    %v1985 = vpop.f32.mrb[0].mxu0
    %v1986 = vpop.f32.mrb[0].mxu0
    %1987 = vdwg.mxu0
    %1988 = vmatprep.subr.bf16.mxu0 %v1523
    %1989 = vmatpush1.bf16.msra.mxu0 %v1522
    %1990 = vmatprep.subr.bf16.mxu0 %v1529
    %1991 = vmatpush1.bf16.msra.mxu0 %v1528
    %1992 = vmatprep.subr.bf16.mxu0 %v1535
    %1993 = vmatpush1.bf16.msra.mxu0 %v1534
    %1994 = vmatprep.subr.bf16.mxu0 %v1541
    %1995 = vmatpush1.bf16.msra.mxu0 %v1540
    %1996 = vmatprep.subr.bf16.mxu0 %v1547
    %1997 = vmatpush1.bf16.msra.mxu0 %v1546
    %1998 = vmatprep.subr.bf16.mxu0 %v1553
    %1999 = vmatpush1.bf16.msra.mxu0 %v1552
    %2000 = vmatprep.subr.bf16.mxu0 %v1559
    %2001 = vmatpush1.bf16.msra.mxu0 %v1558
    %2002 = vmatprep.subr.bf16.mxu0 %v1565
    %2003 = vmatpush1.bf16.msra.mxu0 %v1564
    %2004 = vmatprep.subr.bf16.mxu0 %v1571
    %2005 = vmatpush1.bf16.msra.mxu0 %v1570
    %2006 = vmatprep.subr.bf16.mxu0 %v1577
    %2007 = vmatpush1.bf16.msra.mxu0 %v1576
    %2008 = vmatprep.subr.bf16.mxu0 %v1583
    %2009 = vmatpush1.bf16.msra.mxu0 %v1582
    %2010 = vmatprep.subr.bf16.mxu0 %v1589
    %2011 = vmatpush1.bf16.msra.mxu0 %v1588
    %2012 = vmatprep.subr.bf16.mxu0 %v1595
    %2013 = vmatpush1.bf16.msra.mxu0 %v1594
    %2014 = vmatprep.subr.bf16.mxu0 %v1601
    %2015 = vmatpush1.bf16.msra.mxu0 %v1600
    %2016 = vmatprep.subr.bf16.mxu0 %v1607
    %2017 = vmatpush1.bf16.msra.mxu0 %v1606
    %2018 = vmatprep.subr.bf16.mxu0 %v1613
    %2019 = vmatpush1.bf16.msra.mxu0 %v1612
    %2020 = vmatprep.mubr.bf16.mxu0 %v459
    %2021 = vmatmul.mubr.bf16.gmra.mrb[0].mxu0 %v458
    %v2022 = vpop.f32.mrb[0].mxu0
    %v2023 = vadd.f32 %v1982, %v2022
    %v2024 = vpop.f32.mrb[0].mxu0
    %v2025 = vadd.f32 %v1984, %v2024
    %v2026 = vpop.f32.mrb[0].mxu0
    %v2027 = vpop.f32.mrb[0].mxu0
    %2028 = vdwg.mxu0
    %2029 = vmatprep.subr.bf16.mxu0 %v1333
    %2030 = vmatpush1.bf16.msra.mxu0 %v1332
    %2031 = vmatprep.subr.bf16.mxu0 %v1339
    %2032 = vmatpush1.bf16.msra.mxu0 %v1338
    %2033 = vmatprep.subr.bf16.mxu0 %v1345
    %2034 = vmatpush1.bf16.msra.mxu0 %v1344
    %2035 = vmatprep.subr.bf16.mxu0 %v1351
    %2036 = vmatpush1.bf16.msra.mxu0 %v1350
    %2037 = vmatprep.subr.bf16.mxu0 %v1357
    %2038 = vmatpush1.bf16.msra.mxu0 %v1356
    %2039 = vmatprep.subr.bf16.mxu0 %v1363
    %2040 = vmatpush1.bf16.msra.mxu0 %v1362
    %2041 = vmatprep.subr.bf16.mxu0 %v1369
    %2042 = vmatpush1.bf16.msra.mxu0 %v1368
    %2043 = vmatprep.subr.bf16.mxu0 %v1375
    %2044 = vmatpush1.bf16.msra.mxu0 %v1374
    %2045 = vmatprep.subr.bf16.mxu0 %v1381
    %2046 = vmatpush1.bf16.msra.mxu0 %v1380
    %2047 = vmatprep.subr.bf16.mxu0 %v1387
    %2048 = vmatpush1.bf16.msra.mxu0 %v1386
    %2049 = vmatprep.subr.bf16.mxu0 %v1393
    %2050 = vmatpush1.bf16.msra.mxu0 %v1392
    %2051 = vmatprep.subr.bf16.mxu0 %v1399
    %2052 = vmatpush1.bf16.msra.mxu0 %v1398
    %2053 = vmatprep.subr.bf16.mxu0 %v1405
    %2054 = vmatpush1.bf16.msra.mxu0 %v1404
    %2055 = vmatprep.subr.bf16.mxu0 %v1411
    %2056 = vmatpush1.bf16.msra.mxu0 %v1410
    %2057 = vmatprep.subr.bf16.mxu0 %v1417
    %2058 = vmatpush1.bf16.msra.mxu0 %v1416
    %2059 = vmatprep.subr.bf16.mxu0 %v1423
    %2060 = vmatpush1.bf16.msra.mxu0 %v1422
    %2061 = vmatprep.mubr.bf16.mxu0 %v455
    %2062 = vmatmul.mubr.bf16.gmra.mrb[0].mxu0 %v454
    %v2063 = vpop.f32.mrb[0].mxu0
    %v2064 = vadd.f32 %v426, %v2063
    %v2065 = vpop.f32.mrb[0].mxu0
    %v2066 = vadd.f32 %v430, %v2065
    %v2067 = vpop.f32.mrb[0].mxu0
    %v2068 = vpop.f32.mrb[0].mxu0
    %2069 = vdwg.mxu0
    %2070 = vmatprep.subr.bf16.mxu0 %v1429
    %2071 = vmatpush1.bf16.msra.mxu0 %v1428
    %2072 = vmatprep.subr.bf16.mxu0 %v1435
    %2073 = vmatpush1.bf16.msra.mxu0 %v1434
    %2074 = vmatprep.subr.bf16.mxu0 %v1441
    %2075 = vmatpush1.bf16.msra.mxu0 %v1440
    %2076 = vmatprep.subr.bf16.mxu0 %v1447
    %2077 = vmatpush1.bf16.msra.mxu0 %v1446
    %2078 = vmatprep.subr.bf16.mxu0 %v1453
    %2079 = vmatpush1.bf16.msra.mxu0 %v1452
    %2080 = vmatprep.subr.bf16.mxu0 %v1459
    %2081 = vmatpush1.bf16.msra.mxu0 %v1458
    %2082 = vmatprep.subr.bf16.mxu0 %v1465
    %2083 = vmatpush1.bf16.msra.mxu0 %v1464
    %2084 = vmatprep.subr.bf16.mxu0 %v1471
    %2085 = vmatpush1.bf16.msra.mxu0 %v1470
    %2086 = vmatprep.subr.bf16.mxu0 %v1477
    %2087 = vmatpush1.bf16.msra.mxu0 %v1476
    %2088 = vmatprep.subr.bf16.mxu0 %v1483
    %2089 = vmatpush1.bf16.msra.mxu0 %v1482
    %2090 = vmatprep.subr.bf16.mxu0 %v1489
    %2091 = vmatpush1.bf16.msra.mxu0 %v1488
    %2092 = vmatprep.subr.bf16.mxu0 %v1495
    %2093 = vmatpush1.bf16.msra.mxu0 %v1494
    %2094 = vmatprep.subr.bf16.mxu0 %v1501
    %2095 = vmatpush1.bf16.msra.mxu0 %v1500
    %2096 = vmatprep.subr.bf16.mxu0 %v1507
    %2097 = vmatpush1.bf16.msra.mxu0 %v1506
    %2098 = vmatprep.subr.bf16.mxu0 %v1513
    %2099 = vmatpush1.bf16.msra.mxu0 %v1512
    %2100 = vmatprep.subr.bf16.mxu0 %v1519
    %2101 = vmatpush1.bf16.msra.mxu0 %v1518
    %2102 = vmatprep.mubr.bf16.mxu0 %v457
    %2103 = vmatmul.mubr.bf16.gmra.mrb[0].mxu0 %v456
    %v2104 = vpop.f32.mrb[0].mxu0
    %v2105 = vadd.f32 %v2064, %v2104
    %v2106 = vpop.f32.mrb[0].mxu0
    %v2107 = vadd.f32 %v2066, %v2106
    %v2108 = vpop.f32.mrb[0].mxu0
    %v2109 = vpop.f32.mrb[0].mxu0
    %2110 = vdwg.mxu0
    %2111 = vmatprep.subr.bf16.mxu0 %v1525
    %2112 = vmatpush1.bf16.msra.mxu0 %v1524
    %2113 = vmatprep.subr.bf16.mxu0 %v1531
    %2114 = vmatpush1.bf16.msra.mxu0 %v1530
    %2115 = vmatprep.subr.bf16.mxu0 %v1537
    %2116 = vmatpush1.bf16.msra.mxu0 %v1536
    %2117 = vmatprep.subr.bf16.mxu0 %v1543
    %2118 = vmatpush1.bf16.msra.mxu0 %v1542
    %2119 = vmatprep.subr.bf16.mxu0 %v1549
    %2120 = vmatpush1.bf16.msra.mxu0 %v1548
    %2121 = vmatprep.subr.bf16.mxu0 %v1555
    %2122 = vmatpush1.bf16.msra.mxu0 %v1554
    %2123 = vmatprep.subr.bf16.mxu0 %v1561
    %2124 = vmatpush1.bf16.msra.mxu0 %v1560
    %2125 = vmatprep.subr.bf16.mxu0 %v1567
    %2126 = vmatpush1.bf16.msra.mxu0 %v1566
    %2127 = vmatprep.subr.bf16.mxu0 %v1573
    %2128 = vmatpush1.bf16.msra.mxu0 %v1572
    %2129 = vmatprep.subr.bf16.mxu0 %v1579
    %2130 = vmatpush1.bf16.msra.mxu0 %v1578
    %2131 = vmatprep.subr.bf16.mxu0 %v1585
    %2132 = vmatpush1.bf16.msra.mxu0 %v1584
    %2133 = vmatprep.subr.bf16.mxu0 %v1591
    %2134 = vmatpush1.bf16.msra.mxu0 %v1590
    %2135 = vmatprep.subr.bf16.mxu0 %v1597
    %2136 = vmatpush1.bf16.msra.mxu0 %v1596
    %2137 = vmatprep.subr.bf16.mxu0 %v1603
    %2138 = vmatpush1.bf16.msra.mxu0 %v1602
    %2139 = vmatprep.subr.bf16.mxu0 %v1609
    %2140 = vmatpush1.bf16.msra.mxu0 %v1608
    %2141 = vmatprep.subr.bf16.mxu0 %v1615
    %2142 = vmatpush1.bf16.msra.mxu0 %v1614
    %2143 = vmatprep.mubr.bf16.mxu0 %v459
    %2144 = vmatmul.mubr.bf16.gmra.mrb[0].mxu0 %v458
    %v2145 = vpop.f32.mrb[0].mxu0
    %v2146 = vadd.f32 %v2105, %v2145
    %v2147 = vpop.f32.mrb[0].mxu0
    %v2148 = vadd.f32 %v2107, %v2147
    %v2149 = vpop.f32.mrb[0].mxu0
    %v2150 = vpop.f32.mrb[0].mxu0
    %2151 = vdwg.mxu0
    %2152 = vmatprep.subr.bf16.mxu0 %v1335
    %2153 = vmatpush1.bf16.msra.mxu0 %v1334
    %2154 = vmatprep.subr.bf16.mxu0 %v1341
    %2155 = vmatpush1.bf16.msra.mxu0 %v1340
    %2156 = vmatprep.subr.bf16.mxu0 %v1347
    %2157 = vmatpush1.bf16.msra.mxu0 %v1346
    %2158 = vmatprep.subr.bf16.mxu0 %v1353
    %2159 = vmatpush1.bf16.msra.mxu0 %v1352
    %2160 = vmatprep.subr.bf16.mxu0 %v1359
    %2161 = vmatpush1.bf16.msra.mxu0 %v1358
    %2162 = vmatprep.subr.bf16.mxu0 %v1365
    %2163 = vmatpush1.bf16.msra.mxu0 %v1364
    %2164 = vmatprep.subr.bf16.mxu0 %v1371
    %2165 = vmatpush1.bf16.msra.mxu0 %v1370
    %2166 = vmatprep.subr.bf16.mxu0 %v1377
    %2167 = vmatpush1.bf16.msra.mxu0 %v1376
    %2168 = vmatprep.subr.bf16.mxu0 %v1383
    %2169 = vmatpush1.bf16.msra.mxu0 %v1382
    %2170 = vmatprep.subr.bf16.mxu0 %v1389
    %2171 = vmatpush1.bf16.msra.mxu0 %v1388
    %2172 = vmatprep.subr.bf16.mxu0 %v1395
    %2173 = vmatpush1.bf16.msra.mxu0 %v1394
    %2174 = vmatprep.subr.bf16.mxu0 %v1401
    %2175 = vmatpush1.bf16.msra.mxu0 %v1400
    %2176 = vmatprep.subr.bf16.mxu0 %v1407
    %2177 = vmatpush1.bf16.msra.mxu0 %v1406
    %2178 = vmatprep.subr.bf16.mxu0 %v1413
    %2179 = vmatpush1.bf16.msra.mxu0 %v1412
    %2180 = vmatprep.subr.bf16.mxu0 %v1419
    %2181 = vmatpush1.bf16.msra.mxu0 %v1418
    %2182 = vmatprep.subr.bf16.mxu0 %v1425
    %2183 = vmatpush1.bf16.msra.mxu0 %v1424
    %2184 = vmatprep.mubr.bf16.mxu0 %v455
    %2185 = vmatmul.mubr.bf16.gmra.mrb[0].mxu0 %v454
    %v2186 = vpop.f32.mrb[0].mxu0
    %v2187 = vadd.f32 %v434, %v2186
    %v2188 = vpop.f32.mrb[0].mxu0
    %v2189 = vadd.f32 %v438, %v2188
    %v2190 = vpop.f32.mrb[0].mxu0
    %v2191 = vpop.f32.mrb[0].mxu0
    %2192 = vdwg.mxu0
    %2193 = vmatprep.subr.bf16.mxu0 %v1431
    %2194 = vmatpush1.bf16.msra.mxu0 %v1430
    %2195 = vmatprep.subr.bf16.mxu0 %v1437
    %2196 = vmatpush1.bf16.msra.mxu0 %v1436
    %2197 = vmatprep.subr.bf16.mxu0 %v1443
    %2198 = vmatpush1.bf16.msra.mxu0 %v1442
    %2199 = vmatprep.subr.bf16.mxu0 %v1449
    %2200 = vmatpush1.bf16.msra.mxu0 %v1448
    %2201 = vmatprep.subr.bf16.mxu0 %v1455
    %2202 = vmatpush1.bf16.msra.mxu0 %v1454
    %2203 = vmatprep.subr.bf16.mxu0 %v1461
    %2204 = vmatpush1.bf16.msra.mxu0 %v1460
    %2205 = vmatprep.subr.bf16.mxu0 %v1467
    %2206 = vmatpush1.bf16.msra.mxu0 %v1466
    %2207 = vmatprep.subr.bf16.mxu0 %v1473
    %2208 = vmatpush1.bf16.msra.mxu0 %v1472
    %2209 = vmatprep.subr.bf16.mxu0 %v1479
    %2210 = vmatpush1.bf16.msra.mxu0 %v1478
    %2211 = vmatprep.subr.bf16.mxu0 %v1485
    %2212 = vmatpush1.bf16.msra.mxu0 %v1484
    %2213 = vmatprep.subr.bf16.mxu0 %v1491
    %2214 = vmatpush1.bf16.msra.mxu0 %v1490
    %2215 = vmatprep.subr.bf16.mxu0 %v1497
    %2216 = vmatpush1.bf16.msra.mxu0 %v1496
    %2217 = vmatprep.subr.bf16.mxu0 %v1503
    %2218 = vmatpush1.bf16.msra.mxu0 %v1502
    %2219 = vmatprep.subr.bf16.mxu0 %v1509
    %2220 = vmatpush1.bf16.msra.mxu0 %v1508
    %2221 = vmatprep.subr.bf16.mxu0 %v1515
    %2222 = vmatpush1.bf16.msra.mxu0 %v1514
    %2223 = vmatprep.subr.bf16.mxu0 %v1521
    %2224 = vmatpush1.bf16.msra.mxu0 %v1520
    %2225 = vmatprep.mubr.bf16.mxu0 %v457
    %2226 = vmatmul.mubr.bf16.gmra.mrb[0].mxu0 %v456
    %v2227 = vpop.f32.mrb[0].mxu0
    %v2228 = vadd.f32 %v2187, %v2227
    %v2229 = vpop.f32.mrb[0].mxu0
    %v2230 = vadd.f32 %v2189, %v2229
    %v2231 = vpop.f32.mrb[0].mxu0
    %v2232 = vpop.f32.mrb[0].mxu0
    %2233 = vdwg.mxu0
    %2234 = vmatprep.subr.bf16.mxu0 %v1527
    %2235 = vmatpush1.bf16.msra.mxu0 %v1526
    %2236 = vmatprep.subr.bf16.mxu0 %v1533
    %2237 = vmatpush1.bf16.msra.mxu0 %v1532
    %2238 = vmatprep.subr.bf16.mxu0 %v1539
    %2239 = vmatpush1.bf16.msra.mxu0 %v1538
    %2240 = vmatprep.subr.bf16.mxu0 %v1545
    %2241 = vmatpush1.bf16.msra.mxu0 %v1544
    %2242 = vmatprep.subr.bf16.mxu0 %v1551
    %2243 = vmatpush1.bf16.msra.mxu0 %v1550
    %2244 = vmatprep.subr.bf16.mxu0 %v1557
    %2245 = vmatpush1.bf16.msra.mxu0 %v1556
    %2246 = vmatprep.subr.bf16.mxu0 %v1563
    %2247 = vmatpush1.bf16.msra.mxu0 %v1562
    %2248 = vmatprep.subr.bf16.mxu0 %v1569
    %2249 = vmatpush1.bf16.msra.mxu0 %v1568
    %2250 = vmatprep.subr.bf16.mxu0 %v1575
    %2251 = vmatpush1.bf16.msra.mxu0 %v1574
    %2252 = vmatprep.subr.bf16.mxu0 %v1581
    %2253 = vmatpush1.bf16.msra.mxu0 %v1580
    %2254 = vmatprep.subr.bf16.mxu0 %v1587
    %2255 = vmatpush1.bf16.msra.mxu0 %v1586
    %2256 = vmatprep.subr.bf16.mxu0 %v1593
    %2257 = vmatpush1.bf16.msra.mxu0 %v1592
    %2258 = vmatprep.subr.bf16.mxu0 %v1599
    %2259 = vmatpush1.bf16.msra.mxu0 %v1598
    %2260 = vmatprep.subr.bf16.mxu0 %v1605
    %2261 = vmatpush1.bf16.msra.mxu0 %v1604
    %2262 = vmatprep.subr.bf16.mxu0 %v1611
    %2263 = vmatpush1.bf16.msra.mxu0 %v1610
    %2264 = vmatprep.subr.bf16.mxu0 %v1617
    %2265 = vmatpush1.bf16.msra.mxu0 %v1616
    %2266 = vmatprep.mubr.bf16.mxu0 %v459
    %2267 = vmatmul.mubr.bf16.gmra.mrb[0].mxu0 %v458
    %v2268 = vpop.f32.mrb[0].mxu0
    %v2269 = vadd.f32 %v2228, %v2268
    %v2270 = vpop.f32.mrb[0].mxu0
    %v2271 = vadd.f32 %v2230, %v2270
    %v2272 = vpop.f32.mrb[0].mxu0
    %v2273 = vpop.f32.mrb[0].mxu0
    %2274 = vdwg.mxu0
    %v2275 = vtanh.pop %v2023
    %v2276 = vtanh.pop %v2025
    %v2277 = vtanh.pop %v2146
    %v2278 = vtanh.pop %v2148
    %v2279 = vtanh.pop %v2269
    %v2280 = vtanh.pop %v2271
    %v2281 = vpack.c.bf16 %v2275, %v2275
    %v2282 = vpack.c.bf16 %v2276, %v2276
    %v2283 = vpack.c.bf16 %v2277, %v2277
    %v2284 = vpack.c.bf16 %v2278, %v2278
    %v2285 = vpack.c.bf16 %v2279, %v2279
    %v2286 = vpack.c.bf16 %v2280, %v2280
    %v2287 = vld [vmem:[#allocation6] sm:$0xf]
    %v2288 = vld [vmem:[#allocation6 + $0x4] sm:$0xf]
    %v2289 = vld [vmem:[#allocation6 + $0x8] sm:$0xf]
    %v2290 = vld [vmem:[#allocation6 + $0xc] sm:$0xf]
    %v2291 = vld [vmem:[#allocation6 + $0x10] sm:$0xf]
    %v2292 = vld [vmem:[#allocation6 + $0x14] sm:$0xf]
    %v2293 = vld [vmem:[#allocation6 + $0x18] sm:$0xf]
    %v2294 = vld [vmem:[#allocation6 + $0x1c] sm:$0xf]
    %v2295 = vld [vmem:[#allocation6 + $0x20] sm:$0xf]
    %v2296 = vld [vmem:[#allocation6 + $0x24] sm:$0xf]
    %v2297 = vld [vmem:[#allocation6 + $0x28] sm:$0xf]
    %v2298 = vld [vmem:[#allocation6 + $0x2c] sm:$0xf]
    %v2299 = vld [vmem:[#allocation6 + $0x30] sm:$0xf]
    %v2300 = vld [vmem:[#allocation6 + $0x34] sm:$0xf]
    %v2301 = vld [vmem:[#allocation6 + $0x38] sm:$0xf]
    %v2302 = vld [vmem:[#allocation6 + $0x3c] sm:$0xf]
    %v2303 = vld [vmem:[#allocation6 + $0x40] sm:$0xf]
    %v2304 = vld [vmem:[#allocation6 + $0x44] sm:$0xf]
    %v2305 = vld [vmem:[#allocation6 + $0x48] sm:$0xf]
    %v2306 = vld [vmem:[#allocation6 + $0x4c] sm:$0xf]
    %v2307 = vld [vmem:[#allocation6 + $0x50] sm:$0xf]
    %v2308 = vld [vmem:[#allocation6 + $0x54] sm:$0xf]
    %v2309 = vld [vmem:[#allocation6 + $0x58] sm:$0xf]
    %v2310 = vld [vmem:[#allocation6 + $0x5c] sm:$0xf]
    %v2311 = vld [vmem:[#allocation6 + $0x60] sm:$0xf]
    %v2312 = vld [vmem:[#allocation6 + $0x64] sm:$0xf]
    %v2313 = vld [vmem:[#allocation6 + $0x68] sm:$0xf]
    %v2314 = vld [vmem:[#allocation6 + $0x6c] sm:$0xf]
    %v2315 = vld [vmem:[#allocation6 + $0x70] sm:$0xf]
    %v2316 = vld [vmem:[#allocation6 + $0x74] sm:$0xf]
    %v2317 = vld [vmem:[#allocation6 + $0x78] sm:$0xf]
    %v2318 = vld [vmem:[#allocation6 + $0x7c] sm:$0xf]
    %v2319 = vld [vmem:[#allocation6 + $0x80] sm:$0xf]
    %v2320 = vld [vmem:[#allocation6 + $0x84] sm:$0xf]
    %v2321 = vld [vmem:[#allocation6 + $0x88] sm:$0xf]
    %v2322 = vld [vmem:[#allocation6 + $0x8c] sm:$0xf]
    %v2323 = vld [vmem:[#allocation6 + $0x90] sm:$0xf]
    %v2324 = vld [vmem:[#allocation6 + $0x94] sm:$0xf]
    %v2325 = vld [vmem:[#allocation6 + $0x98] sm:$0xf]
    %v2326 = vld [vmem:[#allocation6 + $0x9c] sm:$0xf]
    %v2327 = vld [vmem:[#allocation6 + $0xa0] sm:$0xf]
    %v2328 = vld [vmem:[#allocation6 + $0xa4] sm:$0xf]
    %v2329 = vld [vmem:[#allocation6 + $0xa8] sm:$0xf]
    %v2330 = vld [vmem:[#allocation6 + $0xac] sm:$0xf]
    %v2331 = vld [vmem:[#allocation6 + $0xb0] sm:$0xf]
    %v2332 = vld [vmem:[#allocation6 + $0xb4] sm:$0xf]
    %v2333 = vld [vmem:[#allocation6 + $0xb8] sm:$0xf]
    %v2334 = vld [vmem:[#allocation6 + $0xbc] sm:$0xf]
    %v2335 = vld [vmem:[#allocation6 + $0xc0] sm:$0xf]
    %v2336 = vld [vmem:[#allocation6 + $0xc4] sm:$0xf]
    %v2337 = vld [vmem:[#allocation6 + $0xc8] sm:$0xf]
    %v2338 = vld [vmem:[#allocation6 + $0xcc] sm:$0xf]
    %v2339 = vld [vmem:[#allocation6 + $0xd0] sm:$0xf]
    %v2340 = vld [vmem:[#allocation6 + $0xd4] sm:$0xf]
    %v2341 = vld [vmem:[#allocation6 + $0xd8] sm:$0xf]
    %v2342 = vld [vmem:[#allocation6 + $0xdc] sm:$0xf]
    %v2343 = vld [vmem:[#allocation6 + $0xe0] sm:$0xf]
    %v2344 = vld [vmem:[#allocation6 + $0xe4] sm:$0xf]
    %v2345 = vld [vmem:[#allocation6 + $0xe8] sm:$0xf]
    %v2346 = vld [vmem:[#allocation6 + $0xec] sm:$0xf]
    %v2347 = vld [vmem:[#allocation6 + $0xf0] sm:$0xf]
    %v2348 = vld [vmem:[#allocation6 + $0xf4] sm:$0xf]
    %v2349 = vld [vmem:[#allocation6 + $0xf8] sm:$0xf]
    %v2350 = vld [vmem:[#allocation6 + $0xfc] sm:$0xf]
    %v2351 = vld [vmem:[#allocation6 + $0x100] sm:$0xf]
    %v2352 = vld [vmem:[#allocation6 + $0x104] sm:$0xf]
    %v2353 = vld [vmem:[#allocation6 + $0x108] sm:$0xf]
    %v2354 = vld [vmem:[#allocation6 + $0x10c] sm:$0xf]
    %v2355 = vld [vmem:[#allocation6 + $0x110] sm:$0xf]
    %v2356 = vld [vmem:[#allocation6 + $0x114] sm:$0xf]
    %v2357 = vld [vmem:[#allocation6 + $0x118] sm:$0xf]
    %v2358 = vld [vmem:[#allocation6 + $0x11c] sm:$0xf]
    %v2359 = vld [vmem:[#allocation6 + $0x120] sm:$0xf]
    %v2360 = vld [vmem:[#allocation6 + $0x124] sm:$0xf]
    %v2361 = vld [vmem:[#allocation6 + $0x128] sm:$0xf]
    %v2362 = vld [vmem:[#allocation6 + $0x12c] sm:$0xf]
    %v2363 = vld [vmem:[#allocation6 + $0x130] sm:$0xf]
    %v2364 = vld [vmem:[#allocation6 + $0x134] sm:$0xf]
    %v2365 = vld [vmem:[#allocation6 + $0x138] sm:$0xf]
    %v2366 = vld [vmem:[#allocation6 + $0x13c] sm:$0xf]
    %v2367 = vld [vmem:[#allocation6 + $0x140] sm:$0xf]
    %v2368 = vld [vmem:[#allocation6 + $0x144] sm:$0xf]
    %v2369 = vld [vmem:[#allocation6 + $0x148] sm:$0xf]
    %v2370 = vld [vmem:[#allocation6 + $0x14c] sm:$0xf]
    %v2371 = vld [vmem:[#allocation6 + $0x150] sm:$0xf]
    %v2372 = vld [vmem:[#allocation6 + $0x154] sm:$0xf]
    %v2373 = vld [vmem:[#allocation6 + $0x158] sm:$0xf]
    %v2374 = vld [vmem:[#allocation6 + $0x15c] sm:$0xf]
    %v2375 = vld [vmem:[#allocation6 + $0x160] sm:$0xf]
    %v2376 = vld [vmem:[#allocation6 + $0x164] sm:$0xf]
    %v2377 = vld [vmem:[#allocation6 + $0x168] sm:$0xf]
    %v2378 = vld [vmem:[#allocation6 + $0x16c] sm:$0xf]
    %v2379 = vld [vmem:[#allocation6 + $0x170] sm:$0xf]
    %v2380 = vld [vmem:[#allocation6 + $0x174] sm:$0xf]
    %v2381 = vld [vmem:[#allocation6 + $0x178] sm:$0xf]
    %v2382 = vld [vmem:[#allocation6 + $0x17c] sm:$0xf]
    %v2383 = vld [vmem:[%s1] sm:$0xff]
    %v2384 = vld [vmem:[%s1 + $0x8] sm:$0xff]
    %v2385 = vld [vmem:[#allocation7] sm:$0xf]
    %v2386 = vld [vmem:[#allocation7 + $0x4] sm:$0xf]
    %v2387 = vld [vmem:[#allocation7 + $0x8] sm:$0xf]
    %v2388 = vld [vmem:[#allocation7 + $0xc] sm:$0xf]
    %v2389 = vld [vmem:[#allocation7 + $0x10] sm:$0xf]
    %v2390 = vld [vmem:[#allocation7 + $0x14] sm:$0xf]
    %v2391 = vld [vmem:[#allocation7 + $0x18] sm:$0xf]
    %v2392 = vld [vmem:[#allocation7 + $0x1c] sm:$0xf]
    %v2393 = vld [vmem:[#allocation7 + $0x20] sm:$0xf]
    %v2394 = vld [vmem:[#allocation7 + $0x24] sm:$0xf]
    %v2395 = vld [vmem:[#allocation7 + $0x28] sm:$0xf]
    %v2396 = vld [vmem:[#allocation7 + $0x2c] sm:$0xf]
    %v2397 = vld [vmem:[#allocation7 + $0x30] sm:$0xf]
    %v2398 = vld [vmem:[#allocation7 + $0x34] sm:$0xf]
    %v2399 = vld [vmem:[#allocation7 + $0x38] sm:$0xf]
    %v2400 = vld [vmem:[#allocation7 + $0x3c] sm:$0xf]
    %v2401 = vld [vmem:[#allocation7 + $0x40] sm:$0xf]
    %v2402 = vld [vmem:[#allocation7 + $0x44] sm:$0xf]
    %v2403 = vld [vmem:[#allocation7 + $0x48] sm:$0xf]
    %v2404 = vld [vmem:[#allocation7 + $0x4c] sm:$0xf]
    %v2405 = vld [vmem:[#allocation7 + $0x50] sm:$0xf]
    %v2406 = vld [vmem:[#allocation7 + $0x54] sm:$0xf]
    %v2407 = vld [vmem:[#allocation7 + $0x58] sm:$0xf]
    %v2408 = vld [vmem:[#allocation7 + $0x5c] sm:$0xf]
    %v2409 = vld [vmem:[#allocation7 + $0x60] sm:$0xf]
    %v2410 = vld [vmem:[#allocation7 + $0x64] sm:$0xf]
    %v2411 = vld [vmem:[#allocation7 + $0x68] sm:$0xf]
    %v2412 = vld [vmem:[#allocation7 + $0x6c] sm:$0xf]
    %v2413 = vld [vmem:[#allocation7 + $0x70] sm:$0xf]
    %v2414 = vld [vmem:[#allocation7 + $0x74] sm:$0xf]
    %v2415 = vld [vmem:[#allocation7 + $0x78] sm:$0xf]
    %v2416 = vld [vmem:[#allocation7 + $0x7c] sm:$0xf]
    %v2417 = vld [vmem:[#allocation7 + $0x80] sm:$0xf]
    %v2418 = vld [vmem:[#allocation7 + $0x84] sm:$0xf]
    %v2419 = vld [vmem:[#allocation7 + $0x88] sm:$0xf]
    %v2420 = vld [vmem:[#allocation7 + $0x8c] sm:$0xf]
    %v2421 = vld [vmem:[#allocation7 + $0x90] sm:$0xf]
    %v2422 = vld [vmem:[#allocation7 + $0x94] sm:$0xf]
    %v2423 = vld [vmem:[#allocation7 + $0x98] sm:$0xf]
    %v2424 = vld [vmem:[#allocation7 + $0x9c] sm:$0xf]
    %v2425 = vld [vmem:[#allocation7 + $0xa0] sm:$0xf]
    %v2426 = vld [vmem:[#allocation7 + $0xa4] sm:$0xf]
    %v2427 = vld [vmem:[#allocation7 + $0xa8] sm:$0xf]
    %v2428 = vld [vmem:[#allocation7 + $0xac] sm:$0xf]
    %v2429 = vld [vmem:[#allocation7 + $0xb0] sm:$0xf]
    %v2430 = vld [vmem:[#allocation7 + $0xb4] sm:$0xf]
    %v2431 = vld [vmem:[#allocation7 + $0xb8] sm:$0xf]
    %v2432 = vld [vmem:[#allocation7 + $0xbc] sm:$0xf]
    %v2433 = vld [vmem:[#allocation7 + $0xc0] sm:$0xf]
    %v2434 = vld [vmem:[#allocation7 + $0xc4] sm:$0xf]
    %v2435 = vld [vmem:[#allocation7 + $0xc8] sm:$0xf]
    %v2436 = vld [vmem:[#allocation7 + $0xcc] sm:$0xf]
    %v2437 = vld [vmem:[#allocation7 + $0xd0] sm:$0xf]
    %v2438 = vld [vmem:[#allocation7 + $0xd4] sm:$0xf]
    %v2439 = vld [vmem:[#allocation7 + $0xd8] sm:$0xf]
    %v2440 = vld [vmem:[#allocation7 + $0xdc] sm:$0xf]
    %v2441 = vld [vmem:[#allocation7 + $0xe0] sm:$0xf]
    %v2442 = vld [vmem:[#allocation7 + $0xe4] sm:$0xf]
    %v2443 = vld [vmem:[#allocation7 + $0xe8] sm:$0xf]
    %v2444 = vld [vmem:[#allocation7 + $0xec] sm:$0xf]
    %v2445 = vld [vmem:[#allocation7 + $0xf0] sm:$0xf]
    %v2446 = vld [vmem:[#allocation7 + $0xf4] sm:$0xf]
    %v2447 = vld [vmem:[#allocation7 + $0xf8] sm:$0xf]
    %v2448 = vld [vmem:[#allocation7 + $0xfc] sm:$0xf]
    %v2451 = vunpack.c.l.b16 %v2383
    %v2452 = vunpack.c.h.b16 %v2383
    %v2453 = vunpack.c.l.b16 %v2384
    %v2454 = vunpack.c.h.b16 %v2384
    %v2455 = vpack.c.b16 %v2451, %v2451
    %v2456 = vpack.c.b16 %v2452, %v2452
    %v2457 = vpack.c.b16 %v2453, %v2453
    %v2458 = vpack.c.b16 %v2454, %v2454
    %v2527 = vunpack.c.l.b16 %v2385
    %v2528 = vunpack.c.l.b16 %v2386
    %v2529 = vunpack.c.l.b16 %v2387
    %v2530 = vunpack.c.l.b16 %v2388
    %v2531 = vunpack.c.l.b16 %v2389
    %v2532 = vunpack.c.l.b16 %v2390
    %v2533 = vunpack.c.l.b16 %v2391
    %v2534 = vunpack.c.l.b16 %v2392
    %v2535 = vunpack.c.l.b16 %v2393
    %v2536 = vunpack.c.l.b16 %v2394
    %v2537 = vunpack.c.l.b16 %v2395
    %v2538 = vunpack.c.l.b16 %v2396
    %v2539 = vunpack.c.l.b16 %v2397
    %v2540 = vunpack.c.l.b16 %v2398
    %v2541 = vunpack.c.l.b16 %v2399
    %v2542 = vunpack.c.l.b16 %v2400
    %v2543 = vunpack.c.l.b16 %v2401
    %v2544 = vunpack.c.l.b16 %v2402
    %v2545 = vunpack.c.l.b16 %v2403
    %v2546 = vunpack.c.l.b16 %v2404
    %v2547 = vunpack.c.l.b16 %v2405
    %v2548 = vunpack.c.l.b16 %v2406
    %v2549 = vunpack.c.l.b16 %v2407
    %v2550 = vunpack.c.l.b16 %v2408
    %v2551 = vunpack.c.l.b16 %v2409
    %v2552 = vunpack.c.l.b16 %v2410
    %v2553 = vunpack.c.l.b16 %v2411
    %v2554 = vunpack.c.l.b16 %v2412
    %v2555 = vunpack.c.l.b16 %v2413
    %v2556 = vunpack.c.l.b16 %v2414
    %v2557 = vunpack.c.l.b16 %v2415
    %v2558 = vunpack.c.l.b16 %v2416
    %v2559 = vunpack.c.l.b16 %v2417
    %v2560 = vunpack.c.l.b16 %v2418
    %v2561 = vunpack.c.l.b16 %v2419
    %v2562 = vunpack.c.l.b16 %v2420
    %v2563 = vunpack.c.l.b16 %v2421
    %v2564 = vunpack.c.l.b16 %v2422
    %v2565 = vunpack.c.l.b16 %v2423
    %v2566 = vunpack.c.l.b16 %v2424
    %v2567 = vunpack.c.l.b16 %v2425
    %v2568 = vunpack.c.l.b16 %v2426
    %v2569 = vunpack.c.l.b16 %v2427
    %v2570 = vunpack.c.l.b16 %v2428
    %v2571 = vunpack.c.l.b16 %v2429
    %v2572 = vunpack.c.l.b16 %v2430
    %v2573 = vunpack.c.l.b16 %v2431
    %v2574 = vunpack.c.l.b16 %v2432
    %v2575 = vunpack.c.l.b16 %v2433
    %v2576 = vunpack.c.l.b16 %v2434
    %v2577 = vunpack.c.l.b16 %v2435
    %v2578 = vunpack.c.l.b16 %v2436
    %v2579 = vunpack.c.l.b16 %v2437
    %v2580 = vunpack.c.l.b16 %v2438
    %v2581 = vunpack.c.l.b16 %v2439
    %v2582 = vunpack.c.l.b16 %v2440
    %v2583 = vunpack.c.l.b16 %v2441
    %v2584 = vunpack.c.l.b16 %v2442
    %v2585 = vunpack.c.l.b16 %v2443
    %v2586 = vunpack.c.l.b16 %v2444
    %v2587 = vunpack.c.l.b16 %v2445
    %v2588 = vunpack.c.l.b16 %v2446
    %v2589 = vunpack.c.l.b16 %v2447
    %v2590 = vunpack.c.l.b16 %v2448
    %v2591 = vpack.c.b16 %v2528, %v2527
    %v2592 = vpack.c.b16 %v2530, %v2529
    %v2593 = vpack.c.b16 %v2532, %v2531
    %v2594 = vpack.c.b16 %v2534, %v2533
    %v2595 = vpack.c.b16 %v2536, %v2535
    %v2596 = vpack.c.b16 %v2538, %v2537
    %v2597 = vpack.c.b16 %v2540, %v2539
    %v2598 = vpack.c.b16 %v2542, %v2541
    %v2599 = vpack.c.b16 %v2544, %v2543
    %v2600 = vpack.c.b16 %v2546, %v2545
    %v2601 = vpack.c.b16 %v2548, %v2547
    %v2602 = vpack.c.b16 %v2550, %v2549
    %v2603 = vpack.c.b16 %v2552, %v2551
    %v2604 = vpack.c.b16 %v2554, %v2553
    %v2605 = vpack.c.b16 %v2556, %v2555
    %v2606 = vpack.c.b16 %v2558, %v2557
    %v2607 = vpack.c.b16 %v2560, %v2559
    %v2608 = vpack.c.b16 %v2562, %v2561
    %v2609 = vpack.c.b16 %v2564, %v2563
    %v2610 = vpack.c.b16 %v2566, %v2565
    %v2611 = vpack.c.b16 %v2568, %v2567
    %v2612 = vpack.c.b16 %v2570, %v2569
    %v2613 = vpack.c.b16 %v2572, %v2571
    %v2614 = vpack.c.b16 %v2574, %v2573
    %v2615 = vpack.c.b16 %v2576, %v2575
    %v2616 = vpack.c.b16 %v2578, %v2577
    %v2617 = vpack.c.b16 %v2580, %v2579
    %v2618 = vpack.c.b16 %v2582, %v2581
    %v2619 = vpack.c.b16 %v2584, %v2583
    %v2620 = vpack.c.b16 %v2586, %v2585
    %v2621 = vpack.c.b16 %v2588, %v2587
    %v2622 = vpack.c.b16 %v2590, %v2589
    %2655 = vmatprep.subr.bf16.mxu0 0
    %2656 = vmatpush1.bf16.msra.mxu0 %v2591
    %2657 = vmatprep.subr.bf16.mxu0 0
    %2658 = vmatpush1.bf16.msra.mxu0 %v2592
    %2659 = vmatprep.subr.bf16.mxu0 0
    %2660 = vmatpush1.bf16.msra.mxu0 %v2593
    %2661 = vmatprep.subr.bf16.mxu0 0
    %2662 = vmatpush1.bf16.msra.mxu0 %v2594
    %2663 = vmatprep.subr.bf16.mxu0 0
    %2664 = vmatpush1.bf16.msra.mxu0 %v2595
    %2665 = vmatprep.subr.bf16.mxu0 0
    %2666 = vmatpush1.bf16.msra.mxu0 %v2596
    %2667 = vmatprep.subr.bf16.mxu0 0
    %2668 = vmatpush1.bf16.msra.mxu0 %v2597
    %2669 = vmatprep.subr.bf16.mxu0 0
    %2670 = vmatpush1.bf16.msra.mxu0 %v2598
    %2671 = vmatprep.subr.bf16.mxu0 0
    %2672 = vmatpush1.bf16.msra.mxu0 %v2599
    %2673 = vmatprep.subr.bf16.mxu0 0
    %2674 = vmatpush1.bf16.msra.mxu0 %v2600
    %2675 = vmatprep.subr.bf16.mxu0 0
    %2676 = vmatpush1.bf16.msra.mxu0 %v2601
    %2677 = vmatprep.subr.bf16.mxu0 0
    %2678 = vmatpush1.bf16.msra.mxu0 %v2602
    %2679 = vmatprep.subr.bf16.mxu0 0
    %2680 = vmatpush1.bf16.msra.mxu0 %v2603
    %2681 = vmatprep.subr.bf16.mxu0 0
    %2682 = vmatpush1.bf16.msra.mxu0 %v2604
    %2683 = vmatprep.subr.bf16.mxu0 0
    %2684 = vmatpush1.bf16.msra.mxu0 %v2605
    %2685 = vmatprep.subr.bf16.mxu0 0
    %2686 = vmatpush1.bf16.msra.mxu0 %v2606
    %2687 = vmatprep.mubr.bf16.mxu0 %v2456
    %2688 = vmatmul.mubr.bf16.gmra.mrb[0].mxu0 %v2455
    %v2689 = vpop.f32.mrb[0].mxu0
    %v2690 = vadd.f32 0.0, %v2689
    %v2691 = vpop.f32.mrb[0].mxu0
    %v2692 = vpop.f32.mrb[0].mxu0
    %v2693 = vpop.f32.mrb[0].mxu0
    %2694 = vdwg.mxu0
    %2695 = vmatprep.subr.bf16.mxu0 0
    %2696 = vmatpush1.bf16.msra.mxu0 %v2607
    %2697 = vmatprep.subr.bf16.mxu0 0
    %2698 = vmatpush1.bf16.msra.mxu0 %v2608
    %2699 = vmatprep.subr.bf16.mxu0 0
    %2700 = vmatpush1.bf16.msra.mxu0 %v2609
    %2701 = vmatprep.subr.bf16.mxu0 0
    %2702 = vmatpush1.bf16.msra.mxu0 %v2610
    %2703 = vmatprep.subr.bf16.mxu0 0
    %2704 = vmatpush1.bf16.msra.mxu0 %v2611
    %2705 = vmatprep.subr.bf16.mxu0 0
    %2706 = vmatpush1.bf16.msra.mxu0 %v2612
    %2707 = vmatprep.subr.bf16.mxu0 0
    %2708 = vmatpush1.bf16.msra.mxu0 %v2613
    %2709 = vmatprep.subr.bf16.mxu0 0
    %2710 = vmatpush1.bf16.msra.mxu0 %v2614
    %2711 = vmatprep.subr.bf16.mxu0 0
    %2712 = vmatpush1.bf16.msra.mxu0 %v2615
    %2713 = vmatprep.subr.bf16.mxu0 0
    %2714 = vmatpush1.bf16.msra.mxu0 %v2616
    %2715 = vmatprep.subr.bf16.mxu0 0
    %2716 = vmatpush1.bf16.msra.mxu0 %v2617
    %2717 = vmatprep.subr.bf16.mxu0 0
    %2718 = vmatpush1.bf16.msra.mxu0 %v2618
    %2719 = vmatprep.subr.bf16.mxu0 0
    %2720 = vmatpush1.bf16.msra.mxu0 %v2619
    %2721 = vmatprep.subr.bf16.mxu0 0
    %2722 = vmatpush1.bf16.msra.mxu0 %v2620
    %2723 = vmatprep.subr.bf16.mxu0 0
    %2724 = vmatpush1.bf16.msra.mxu0 %v2621
    %2725 = vmatprep.subr.bf16.mxu0 0
    %2726 = vmatpush1.bf16.msra.mxu0 %v2622
    %2727 = vmatprep.mubr.bf16.mxu0 %v2458
    %2728 = vmatmul.mubr.bf16.gmra.mrb[0].mxu0 %v2457
    %v2729 = vpop.f32.mrb[0].mxu0
    %v2730 = vadd.f32 %v2690, %v2729
    %v2731 = vpop.f32.mrb[0].mxu0
    %v2732 = vpop.f32.mrb[0].mxu0
    %v2733 = vpop.f32.mrb[0].mxu0
    %2734 = vdwg.mxu0
    %v2831 = vunpack.c.l.b16 %v2287
    %v2832 = vunpack.c.l.b16 %v2288
    %v2833 = vunpack.c.l.b16 %v2289
    %v2834 = vunpack.c.l.b16 %v2290
    %v2835 = vunpack.c.l.b16 %v2291
    %v2836 = vunpack.c.l.b16 %v2292
    %v2837 = vunpack.c.l.b16 %v2293
    %v2838 = vunpack.c.l.b16 %v2294
    %v2839 = vunpack.c.l.b16 %v2295
    %v2840 = vunpack.c.l.b16 %v2296
    %v2841 = vunpack.c.l.b16 %v2297
    %v2842 = vunpack.c.l.b16 %v2298
    %v2843 = vunpack.c.l.b16 %v2299
    %v2844 = vunpack.c.l.b16 %v2300
    %v2845 = vunpack.c.l.b16 %v2301
    %v2846 = vunpack.c.l.b16 %v2302
    %v2847 = vunpack.c.l.b16 %v2303
    %v2848 = vunpack.c.l.b16 %v2304
    %v2849 = vunpack.c.l.b16 %v2305
    %v2850 = vunpack.c.l.b16 %v2306
    %v2851 = vunpack.c.l.b16 %v2307
    %v2852 = vunpack.c.l.b16 %v2308
    %v2853 = vunpack.c.l.b16 %v2309
    %v2854 = vunpack.c.l.b16 %v2310
    %v2855 = vunpack.c.l.b16 %v2311
    %v2856 = vunpack.c.l.b16 %v2312
    %v2857 = vunpack.c.l.b16 %v2313
    %v2858 = vunpack.c.l.b16 %v2314
    %v2859 = vunpack.c.l.b16 %v2315
    %v2860 = vunpack.c.l.b16 %v2316
    %v2861 = vunpack.c.l.b16 %v2317
    %v2862 = vunpack.c.l.b16 %v2318
    %v2863 = vunpack.c.l.b16 %v2319
    %v2864 = vunpack.c.l.b16 %v2320
    %v2865 = vunpack.c.l.b16 %v2321
    %v2866 = vunpack.c.l.b16 %v2322
    %v2867 = vunpack.c.l.b16 %v2323
    %v2868 = vunpack.c.l.b16 %v2324
    %v2869 = vunpack.c.l.b16 %v2325
    %v2870 = vunpack.c.l.b16 %v2326
    %v2871 = vunpack.c.l.b16 %v2327
    %v2872 = vunpack.c.l.b16 %v2328
    %v2873 = vunpack.c.l.b16 %v2329
    %v2874 = vunpack.c.l.b16 %v2330
    %v2875 = vunpack.c.l.b16 %v2331
    %v2876 = vunpack.c.l.b16 %v2332
    %v2877 = vunpack.c.l.b16 %v2333
    %v2878 = vunpack.c.l.b16 %v2334
    %v2879 = vunpack.c.l.b16 %v2335
    %v2880 = vunpack.c.l.b16 %v2336
    %v2881 = vunpack.c.l.b16 %v2337
    %v2882 = vunpack.c.l.b16 %v2338
    %v2883 = vunpack.c.l.b16 %v2339
    %v2884 = vunpack.c.l.b16 %v2340
    %v2885 = vunpack.c.l.b16 %v2341
    %v2886 = vunpack.c.l.b16 %v2342
    %v2887 = vunpack.c.l.b16 %v2343
    %v2888 = vunpack.c.l.b16 %v2344
    %v2889 = vunpack.c.l.b16 %v2345
    %v2890 = vunpack.c.l.b16 %v2346
    %v2891 = vunpack.c.l.b16 %v2347
    %v2892 = vunpack.c.l.b16 %v2348
    %v2893 = vunpack.c.l.b16 %v2349
    %v2894 = vunpack.c.l.b16 %v2350
    %v2895 = vunpack.c.l.b16 %v2351
    %v2896 = vunpack.c.l.b16 %v2352
    %v2897 = vunpack.c.l.b16 %v2353
    %v2898 = vunpack.c.l.b16 %v2354
    %v2899 = vunpack.c.l.b16 %v2355
    %v2900 = vunpack.c.l.b16 %v2356
    %v2901 = vunpack.c.l.b16 %v2357
    %v2902 = vunpack.c.l.b16 %v2358
    %v2903 = vunpack.c.l.b16 %v2359
    %v2904 = vunpack.c.l.b16 %v2360
    %v2905 = vunpack.c.l.b16 %v2361
    %v2906 = vunpack.c.l.b16 %v2362
    %v2907 = vunpack.c.l.b16 %v2363
    %v2908 = vunpack.c.l.b16 %v2364
    %v2909 = vunpack.c.l.b16 %v2365
    %v2910 = vunpack.c.l.b16 %v2366
    %v2911 = vunpack.c.l.b16 %v2367
    %v2912 = vunpack.c.l.b16 %v2368
    %v2913 = vunpack.c.l.b16 %v2369
    %v2914 = vunpack.c.l.b16 %v2370
    %v2915 = vunpack.c.l.b16 %v2371
    %v2916 = vunpack.c.l.b16 %v2372
    %v2917 = vunpack.c.l.b16 %v2373
    %v2918 = vunpack.c.l.b16 %v2374
    %v2919 = vunpack.c.l.b16 %v2375
    %v2920 = vunpack.c.l.b16 %v2376
    %v2921 = vunpack.c.l.b16 %v2377
    %v2922 = vunpack.c.l.b16 %v2378
    %v2923 = vunpack.c.l.b16 %v2379
    %v2924 = vunpack.c.l.b16 %v2380
    %v2925 = vunpack.c.l.b16 %v2381
    %v2926 = vunpack.c.l.b16 %v2382
    %v2927 = vpack.c.b16 %v2832, %v2831
    %v2928 = vpack.c.b16 %v2834, %v2833
    %v2929 = vpack.c.b16 %v2836, %v2835
    %v2930 = vpack.c.b16 %v2838, %v2837
    %v2931 = vpack.c.b16 %v2840, %v2839
    %v2932 = vpack.c.b16 %v2842, %v2841
    %v2933 = vpack.c.b16 %v2844, %v2843
    %v2934 = vpack.c.b16 %v2846, %v2845
    %v2935 = vpack.c.b16 %v2848, %v2847
    %v2936 = vpack.c.b16 %v2850, %v2849
    %v2937 = vpack.c.b16 %v2852, %v2851
    %v2938 = vpack.c.b16 %v2854, %v2853
    %v2939 = vpack.c.b16 %v2856, %v2855
    %v2940 = vpack.c.b16 %v2858, %v2857
    %v2941 = vpack.c.b16 %v2860, %v2859
    %v2942 = vpack.c.b16 %v2862, %v2861
    %v2943 = vpack.c.b16 %v2864, %v2863
    %v2944 = vpack.c.b16 %v2866, %v2865
    %v2945 = vpack.c.b16 %v2868, %v2867
    %v2946 = vpack.c.b16 %v2870, %v2869
    %v2947 = vpack.c.b16 %v2872, %v2871
    %v2948 = vpack.c.b16 %v2874, %v2873
    %v2949 = vpack.c.b16 %v2876, %v2875
    %v2950 = vpack.c.b16 %v2878, %v2877
    %v2951 = vpack.c.b16 %v2880, %v2879
    %v2952 = vpack.c.b16 %v2882, %v2881
    %v2953 = vpack.c.b16 %v2884, %v2883
    %v2954 = vpack.c.b16 %v2886, %v2885
    %v2955 = vpack.c.b16 %v2888, %v2887
    %v2956 = vpack.c.b16 %v2890, %v2889
    %v2957 = vpack.c.b16 %v2892, %v2891
    %v2958 = vpack.c.b16 %v2894, %v2893
    %v2959 = vpack.c.b16 %v2896, %v2895
    %v2960 = vpack.c.b16 %v2898, %v2897
    %v2961 = vpack.c.b16 %v2900, %v2899
    %v2962 = vpack.c.b16 %v2902, %v2901
    %v2963 = vpack.c.b16 %v2904, %v2903
    %v2964 = vpack.c.b16 %v2906, %v2905
    %v2965 = vpack.c.b16 %v2908, %v2907
    %v2966 = vpack.c.b16 %v2910, %v2909
    %v2967 = vpack.c.b16 %v2912, %v2911
    %v2968 = vpack.c.b16 %v2914, %v2913
    %v2969 = vpack.c.b16 %v2916, %v2915
    %v2970 = vpack.c.b16 %v2918, %v2917
    %v2971 = vpack.c.b16 %v2920, %v2919
    %v2972 = vpack.c.b16 %v2922, %v2921
    %v2973 = vpack.c.b16 %v2924, %v2923
    %v2974 = vpack.c.b16 %v2926, %v2925
    %3023 = vmatprep.subr.bf16.mxu0 0
    %3024 = vmatpush1.bf16.msra.mxu0 %v2927
    %3025 = vmatprep.subr.bf16.mxu0 0
    %3026 = vmatpush1.bf16.msra.mxu0 %v2928
    %3027 = vmatprep.subr.bf16.mxu0 0
    %3028 = vmatpush1.bf16.msra.mxu0 %v2929
    %3029 = vmatprep.subr.bf16.mxu0 0
    %3030 = vmatpush1.bf16.msra.mxu0 %v2930
    %3031 = vmatprep.subr.bf16.mxu0 0
    %3032 = vmatpush1.bf16.msra.mxu0 %v2931
    %3033 = vmatprep.subr.bf16.mxu0 0
    %3034 = vmatpush1.bf16.msra.mxu0 %v2932
    %3035 = vmatprep.subr.bf16.mxu0 0
    %3036 = vmatpush1.bf16.msra.mxu0 %v2933
    %3037 = vmatprep.subr.bf16.mxu0 0
    %3038 = vmatpush1.bf16.msra.mxu0 %v2934
    %3039 = vmatprep.subr.bf16.mxu0 0
    %3040 = vmatpush1.bf16.msra.mxu0 %v2935
    %3041 = vmatprep.subr.bf16.mxu0 0
    %3042 = vmatpush1.bf16.msra.mxu0 %v2936
    %3043 = vmatprep.subr.bf16.mxu0 0
    %3044 = vmatpush1.bf16.msra.mxu0 %v2937
    %3045 = vmatprep.subr.bf16.mxu0 0
    %3046 = vmatpush1.bf16.msra.mxu0 %v2938
    %3047 = vmatprep.subr.bf16.mxu0 0
    %3048 = vmatpush1.bf16.msra.mxu0 %v2939
    %3049 = vmatprep.subr.bf16.mxu0 0
    %3050 = vmatpush1.bf16.msra.mxu0 %v2940
    %3051 = vmatprep.subr.bf16.mxu0 0
    %3052 = vmatpush1.bf16.msra.mxu0 %v2941
    %3053 = vmatprep.subr.bf16.mxu0 0
    %3054 = vmatpush1.bf16.msra.mxu0 %v2942
    %3055 = vmatprep.mubr.bf16.mxu0 %v2282
    %3056 = vmatmul.mubr.bf16.gmra.mrb[0].mxu0 %v2281
    %v3057 = vpop.f32.mrb[0].mxu0
    %v3058 = vadd.f32 %v2730, %v3057
    %v3059 = vpop.f32.mrb[0].mxu0
    %v3060 = vpop.f32.mrb[0].mxu0
    %v3061 = vpop.f32.mrb[0].mxu0
    %3062 = vdwg.mxu0
    %3063 = vmatprep.subr.bf16.mxu0 0
    %3064 = vmatpush1.bf16.msra.mxu0 %v2943
    %3065 = vmatprep.subr.bf16.mxu0 0
    %3066 = vmatpush1.bf16.msra.mxu0 %v2944
    %3067 = vmatprep.subr.bf16.mxu0 0
    %3068 = vmatpush1.bf16.msra.mxu0 %v2945
    %3069 = vmatprep.subr.bf16.mxu0 0
    %3070 = vmatpush1.bf16.msra.mxu0 %v2946
    %3071 = vmatprep.subr.bf16.mxu0 0
    %3072 = vmatpush1.bf16.msra.mxu0 %v2947
    %3073 = vmatprep.subr.bf16.mxu0 0
    %3074 = vmatpush1.bf16.msra.mxu0 %v2948
    %3075 = vmatprep.subr.bf16.mxu0 0
    %3076 = vmatpush1.bf16.msra.mxu0 %v2949
    %3077 = vmatprep.subr.bf16.mxu0 0
    %3078 = vmatpush1.bf16.msra.mxu0 %v2950
    %3079 = vmatprep.subr.bf16.mxu0 0
    %3080 = vmatpush1.bf16.msra.mxu0 %v2951
    %3081 = vmatprep.subr.bf16.mxu0 0
    %3082 = vmatpush1.bf16.msra.mxu0 %v2952
    %3083 = vmatprep.subr.bf16.mxu0 0
    %3084 = vmatpush1.bf16.msra.mxu0 %v2953
    %3085 = vmatprep.subr.bf16.mxu0 0
    %3086 = vmatpush1.bf16.msra.mxu0 %v2954
    %3087 = vmatprep.subr.bf16.mxu0 0
    %3088 = vmatpush1.bf16.msra.mxu0 %v2955
    %3089 = vmatprep.subr.bf16.mxu0 0
    %3090 = vmatpush1.bf16.msra.mxu0 %v2956
    %3091 = vmatprep.subr.bf16.mxu0 0
    %3092 = vmatpush1.bf16.msra.mxu0 %v2957
    %3093 = vmatprep.subr.bf16.mxu0 0
    %3094 = vmatpush1.bf16.msra.mxu0 %v2958
    %3095 = vmatprep.mubr.bf16.mxu0 %v2284
    %3096 = vmatmul.mubr.bf16.gmra.mrb[0].mxu0 %v2283
    %v3097 = vpop.f32.mrb[0].mxu0
    %v3098 = vadd.f32 %v3058, %v3097
    %v3099 = vpop.f32.mrb[0].mxu0
    %v3100 = vpop.f32.mrb[0].mxu0
    %v3101 = vpop.f32.mrb[0].mxu0
    %3102 = vdwg.mxu0
    %3103 = vmatprep.subr.bf16.mxu0 0
    %3104 = vmatpush1.bf16.msra.mxu0 %v2959
    %3105 = vmatprep.subr.bf16.mxu0 0
    %3106 = vmatpush1.bf16.msra.mxu0 %v2960
    %3107 = vmatprep.subr.bf16.mxu0 0
    %3108 = vmatpush1.bf16.msra.mxu0 %v2961
    %3109 = vmatprep.subr.bf16.mxu0 0
    %3110 = vmatpush1.bf16.msra.mxu0 %v2962
    %3111 = vmatprep.subr.bf16.mxu0 0
    %3112 = vmatpush1.bf16.msra.mxu0 %v2963
    %3113 = vmatprep.subr.bf16.mxu0 0
    %3114 = vmatpush1.bf16.msra.mxu0 %v2964
    %3115 = vmatprep.subr.bf16.mxu0 0
    %3116 = vmatpush1.bf16.msra.mxu0 %v2965
    %3117 = vmatprep.subr.bf16.mxu0 0
    %3118 = vmatpush1.bf16.msra.mxu0 %v2966
    %3119 = vmatprep.subr.bf16.mxu0 0
    %3120 = vmatpush1.bf16.msra.mxu0 %v2967
    %3121 = vmatprep.subr.bf16.mxu0 0
    %3122 = vmatpush1.bf16.msra.mxu0 %v2968
    %3123 = vmatprep.subr.bf16.mxu0 0
    %3124 = vmatpush1.bf16.msra.mxu0 %v2969
    %3125 = vmatprep.subr.bf16.mxu0 0
    %3126 = vmatpush1.bf16.msra.mxu0 %v2970
    %3127 = vmatprep.subr.bf16.mxu0 0
    %3128 = vmatpush1.bf16.msra.mxu0 %v2971
    %3129 = vmatprep.subr.bf16.mxu0 0
    %3130 = vmatpush1.bf16.msra.mxu0 %v2972
    %3131 = vmatprep.subr.bf16.mxu0 0
    %3132 = vmatpush1.bf16.msra.mxu0 %v2973
    %3133 = vmatprep.subr.bf16.mxu0 0
    %3134 = vmatpush1.bf16.msra.mxu0 %v2974
    %3135 = vmatprep.mubr.bf16.mxu0 %v2286
    %3136 = vmatmul.mubr.bf16.gmra.mrb[0].mxu0 %v2285
    %v3137 = vpop.f32.mrb[0].mxu0
    %v3138 = vadd.f32 %v3098, %v3137
    %v3139 = vpop.f32.mrb[0].mxu0
    %v3140 = vpop.f32.mrb[0].mxu0
    %v3141 = vpop.f32.mrb[0].mxu0
    %3142 = vdwg.mxu0
    %v3143 = vld [vmem:[#allocation9] sm:$0x1]
    %v3145 = vlaneseq
    %v3146 = vshrl.u32 %v3145, 7
    %v3147 = vsub.s32 0, %v3146
    %v3148 = vrot.slane %v3143, %v3147
    %v3150 = vadd.f32 %v3138, %v3148
    %v3151 = vmax.f32 %v3150, 0.0
    %v3152 = vpack.c.bf16 %v3151, %v3151
    %v3153 = vld [vmem:[#allocation10] sm:$0xf]
    %v3154 = vld [vmem:[#allocation10 + $0x4] sm:$0xf]
    %v3155 = vld [vmem:[#allocation10 + $0x8] sm:$0xf]
    %v3156 = vld [vmem:[#allocation10 + $0xc] sm:$0xf]
    %v3157 = vld [vmem:[#allocation10 + $0x10] sm:$0xf]
    %v3158 = vld [vmem:[#allocation10 + $0x14] sm:$0xf]
    %v3159 = vld [vmem:[#allocation10 + $0x18] sm:$0xf]
    %v3160 = vld [vmem:[#allocation10 + $0x1c] sm:$0xf]
    %v3161 = vld [vmem:[#allocation10 + $0x20] sm:$0xf]
    %v3162 = vld [vmem:[#allocation10 + $0x24] sm:$0xf]
    %v3163 = vld [vmem:[#allocation10 + $0x28] sm:$0xf]
    %v3164 = vld [vmem:[#allocation10 + $0x2c] sm:$0xf]
    %v3165 = vld [vmem:[#allocation10 + $0x30] sm:$0xf]
    %v3166 = vld [vmem:[#allocation10 + $0x34] sm:$0xf]
    %v3167 = vld [vmem:[#allocation10 + $0x38] sm:$0xf]
    %v3168 = vld [vmem:[#allocation10 + $0x3c] sm:$0xf]
    %v3169 = vld [vmem:[#allocation12] sm:$0x1]
    %v3171 = vlaneseq
    %v3172 = vshrl.u32 %v3171, 7
    %v3173 = vsub.s32 0, %v3172
    %v3174 = vrot.slane %v3169, %v3173
    %v3192 = vunpack.c.l.b16 %v3153
    %v3193 = vunpack.c.l.b16 %v3154
    %v3194 = vunpack.c.l.b16 %v3155
    %v3195 = vunpack.c.l.b16 %v3156
    %v3196 = vunpack.c.l.b16 %v3157
    %v3197 = vunpack.c.l.b16 %v3158
    %v3198 = vunpack.c.l.b16 %v3159
    %v3199 = vunpack.c.l.b16 %v3160
    %v3200 = vunpack.c.l.b16 %v3161
    %v3201 = vunpack.c.l.b16 %v3162
    %v3202 = vunpack.c.l.b16 %v3163
    %v3203 = vunpack.c.l.b16 %v3164
    %v3204 = vunpack.c.l.b16 %v3165
    %v3205 = vunpack.c.l.b16 %v3166
    %v3206 = vunpack.c.l.b16 %v3167
    %v3207 = vunpack.c.l.b16 %v3168
    %v3208 = vpack.c.b16 %v3193, %v3192
    %v3209 = vpack.c.b16 %v3195, %v3194
    %v3210 = vpack.c.b16 %v3197, %v3196
    %v3211 = vpack.c.b16 %v3199, %v3198
    %v3212 = vpack.c.b16 %v3201, %v3200
    %v3213 = vpack.c.b16 %v3203, %v3202
    %v3214 = vpack.c.b16 %v3205, %v3204
    %v3215 = vpack.c.b16 %v3207, %v3206
    %3224 = vmatprep.subr.bf16.mxu0 0
    %3225 = vmatpush1.bf16.msra.mxu0 %v3208
    %3226 = vmatprep.subr.bf16.mxu0 0
    %3227 = vmatpush1.bf16.msra.mxu0 %v3209
    %3228 = vmatprep.subr.bf16.mxu0 0
    %3229 = vmatpush1.bf16.msra.mxu0 %v3210
    %3230 = vmatprep.subr.bf16.mxu0 0
    %3231 = vmatpush1.bf16.msra.mxu0 %v3211
    %3232 = vmatprep.subr.bf16.mxu0 0
    %3233 = vmatpush1.bf16.msra.mxu0 %v3212
    %3234 = vmatprep.subr.bf16.mxu0 0
    %3235 = vmatpush1.bf16.msra.mxu0 %v3213
    %3236 = vmatprep.subr.bf16.mxu0 0
    %3237 = vmatpush1.bf16.msra.mxu0 %v3214
    %3238 = vmatprep.subr.bf16.mxu0 0
    %3239 = vmatpush1.bf16.msra.mxu0 %v3215
    %3240 = vmatprep.subr.bf16.mxu0 0
    %3241 = vmatpush1.bf16.msra.mxu0 0
    %3242 = vmatprep.subr.bf16.mxu0 0
    %3243 = vmatpush1.bf16.msra.mxu0 0
    %3244 = vmatprep.subr.bf16.mxu0 0
    %3245 = vmatpush1.bf16.msra.mxu0 0
    %3246 = vmatprep.subr.bf16.mxu0 0
    %3247 = vmatpush1.bf16.msra.mxu0 0
    %3248 = vmatprep.subr.bf16.mxu0 0
    %3249 = vmatpush1.bf16.msra.mxu0 0
    %3250 = vmatprep.subr.bf16.mxu0 0
    %3251 = vmatpush1.bf16.msra.mxu0 0
    %3252 = vmatprep.subr.bf16.mxu0 0
    %3253 = vmatpush1.bf16.msra.mxu0 0
    %3254 = vmatprep.subr.bf16.mxu0 0
    %3255 = vmatpush1.bf16.msra.mxu0 0
    %3256 = vmatprep.mubr.bf16.mxu0 0
    %3257 = vmatmul.mubr.bf16.gmra.mrb[0].mxu0 %v3152
    %v3258 = vpop.f32.mrb[0].mxu0
    %v3259 = vadd.f32 %v3174, %v3258
    %v3260 = vpop.f32.mrb[0].mxu0
    %v3261 = vpop.f32.mrb[0].mxu0
    %v3262 = vpop.f32.mrb[0].mxu0
    %3263 = vdwg.mxu0
    %3264 = vst [vmem:[%s9] sm:$0xff] %v3259
    // Predicated region
    $region66: #{multimodal_classifier_forward.1} parent=1 // pred_check
      _
    $region67: #{multimodal_classifier_forward.1} parent=1 // pred_check_branch
      %3266 = sbr.rel (0) target = $region69
    $region68: #{multimodal_classifier_forward.1} parent=1 // pred_region
      _
    $region69: #{multimodal_classifier_forward.1} parent=1 // pred_fallthru
      _
    // Predicated region
    $region70: #{multimodal_classifier_forward.1} parent=1 // pred_check
      _
    $region71: #{multimodal_classifier_forward.1} parent=1 // pred_check_branch
      %3268 = sbr.rel (0) target = $region73
    $region72: #{multimodal_classifier_forward.1} parent=1 // pred_region
      _
    $region73: #{multimodal_classifier_forward.1} parent=1 // pred_fallthru
      _
    %3269 = vsyncpa [#allocation3], 1
    %3270 = vsyncpa [#allocation5], 1
    %3271 = vsyncpa [#allocation8], 1
    %3272 = vsyncpa [#allocation11], 1

</llo_original>
